<compile_context>
chip_gen: v5e
topology: v5e:2x2
jax: 0.10.0
libtpu: 0.0.40
codegen_flags: <defaults>
</compile_context>

<pallas_src>
import functools

import jax
import jax.numpy as jnp
from jax.experimental import pallas as pl
from jax.experimental.pallas import tpu as pltpu


# --------------------------------------------------------------------------------------
# Kernel 1: per-batch Mamba(src) + residual, plus per-batch BatchNorm partial statistics.
# --------------------------------------------------------------------------------------
def _mamba_residual_kernel(
    src_ref, w_in_ref, conv_w_ref, conv_b_ref, w_xproj_ref, b_dt_ref,
    A_log_ref, D_ref, w_out_ref,
    res_ref, stats_ref,
    dA_ref, dBu_ref, h_ref,
):
    L, _Dm = src_ref.shape
    d_conv, d_inner = conv_w_ref.shape
    d_state = A_log_ref.shape[0]
    f32, bf16 = jnp.float32, jnp.bfloat16

    src = src_ref[...].astype(f32)                                   # (L, Dm)

    # ---- fused in_proj (bias=False): one MXU call for both x and z branches ----
    xz = jnp.dot(src.astype(bf16), w_in_ref[...],
                 preferred_element_type=f32)                         # (L, 2*d_inner)
    x = xz[:, :d_inner]
    z = xz[:, d_inner:]

    # ---- causal depthwise conv1d (kernel=d_conv, padding=d_conv-1, keep first L) + SiLU ----
    # y[t] = sum_k w[k] * x[t - (d_conv-1) + k];  one zero-pad, d_conv static slices.
    x_pad = jnp.concatenate(
        [jnp.zeros((d_conv - 1, d_inner), f32), x], axis=0)          # (L+d_conv-1, d_inner)
    acc = jnp.zeros((L, d_inner), f32)
    for k in range(d_conv):
        acc = acc + x_pad[k:k + L, :] * conv_w_ref[k:k + 1, :]
    u = jax.nn.silu(acc + conv_b_ref[...])                           # (L, d_inner)

    # ---- x_proj with dt_proj folded in: ONE MXU call yields (dt_pre | B | C) ----
    dbc = jnp.dot(u.astype(bf16), w_xproj_ref[...],
                  preferred_element_type=f32)                        # (L, d_inner+2*d_state)
    delta = jax.nn.softplus(dbc[:, :d_inner] + b_dt_ref[...])        # (L, d_inner)
    Bm = dbc[:, d_inner:d_inner + d_state]                           # (L, d_state)
    Cm = dbc[:, d_inner + d_state:]                                  # (L, d_state)

    # ---- scan coefficients precomputed off the serial chain; lane axis = d_inner ----
    A = -jnp.exp(A_log_ref[...])                                     # (d_state, d_inner)
    dA_ref[...] = jnp.exp(delta[:, None, :] * A[None, :, :])         # (L, d_state, d_inner)
    dBu_ref[...] = (delta * u)[:, None, :] * Bm[:, :, None]          # (L, d_state, d_inner)

    # ---- serial recurrence: pure VPU FMA on (d_state, d_inner); state history to scratch ----
    # L is small at these shapes; the static unroll keeps the chain visible to the scheduler.
    h = jnp.zeros((d_state, d_inner), f32)
    for t in range(L):
        h = dA_ref[t] * h + dBu_ref[t]
        h_ref[t] = h

    # vectorized scan output: one bulk multiply + reduce over d_state (off the critical chain)
    y = jnp.sum(h_ref[...] * Cm[:, :, None], axis=1)                 # (L, d_inner)
    y = (y + u * D_ref[...]) * jax.nn.silu(z)

    # ---- out_proj (bias=False) + residual (dropout p=0 is identity) ----
    res = src + jnp.dot(y.astype(bf16), w_out_ref[...], preferred_element_type=f32)
    res_ref[...] = res

    # ---- per-batch BatchNorm partial stats: [sum; sum of squares] over the L rows ----
    stats_ref[...] = jnp.concatenate(
        [jnp.sum(res, axis=0, keepdims=True),
         jnp.sum(res * res, axis=0, keepdims=True)], axis=0)         # (2, Dm)


# --------------------------------------------------------------------------------------
# Kernel 2: apply the (pre-folded) BatchNorm scale/shift, batch-parallel.
# --------------------------------------------------------------------------------------
def _bn_apply_kernel(res_ref, scale_ref, shift_ref, out_ref):
    out_ref[...] = res_ref[...] * scale_ref[...] + shift_ref[...]


@functools.partial(jax.jit, static_argnames=("eps",))
def tsm_encoder_layer(src, params, eps=1e-5):
    B, L, Dm = src.shape
    _d_conv, d_inner = params["conv_w"].shape
    d_state = params["A_log_t"].shape[0]

    def _full(p):
        nd = p.ndim
        return pl.BlockSpec(p.shape, lambda b, _nd=nd: (0,) * _nd)

    weights = (params["w_in_t"], params["conv_w"], params["conv_b"],
               params["w_xproj_t"], params["b_dt"],
               params["A_log_t"], params["D"], params["w_out_t"])

    res, stats = pl.pallas_call(
        _mamba_residual_kernel,
        grid=(B,),
        in_specs=[pl.BlockSpec((None, L, Dm), lambda b: (b, 0, 0))]
                 + [_full(w) for w in weights],
        out_specs=(pl.BlockSpec((None, L, Dm), lambda b: (b, 0, 0)),
                   pl.BlockSpec((None, 2, Dm), lambda b: (b, 0, 0))),
        out_shape=(jax.ShapeDtypeStruct((B, L, Dm), jnp.float32),
                   jax.ShapeDtypeStruct((B, 2, Dm), jnp.float32)),
        scratch_shapes=[pltpu.VMEM((L, d_state, d_inner), jnp.float32),   # dA
                        pltpu.VMEM((L, d_state, d_inner), jnp.float32),   # dBu
                        pltpu.VMEM((L, d_state, d_inner), jnp.float32)],  # h_t history
        compiler_params=pltpu.CompilerParams(
            dimension_semantics=("parallel",),
            vmem_limit_bytes=32 * 1024 * 1024),
    )(src, *weights)

    # Cross-batch BatchNorm statistics (tiny (B,2,Dm) reduce) + folded scale/shift.
    n = float(B * L)
    tot = jnp.sum(stats, axis=0)                                     # (2, Dm)
    mean = tot[0] / n
    var = jnp.maximum(tot[1] / n - mean * mean, 0.0)                 # biased var (BN training)
    scale = (params["gamma"][0] * jax.lax.rsqrt(var + eps))[None, :] # (1, Dm)
    shift = (params["beta"][0] - mean * scale[0])[None, :]           # (1, Dm)

    out = pl.pallas_call(
        _bn_apply_kernel,
        grid=(B,),
        in_specs=[pl.BlockSpec((None, L, Dm), lambda b: (b, 0, 0)),
                  pl.BlockSpec((1, Dm), lambda b: (0, 0)),
                  pl.BlockSpec((1, Dm), lambda b: (0, 0))],
        out_specs=pl.BlockSpec((None, L, Dm), lambda b: (b, 0, 0)),
        out_shape=jax.ShapeDtypeStruct((B, L, Dm), jnp.float32),
        compiler_params=pltpu.CompilerParams(dimension_semantics=("parallel",)),
    )(res, scale, shift)
    return out


# --------------------------------------------------------------------------------------
# Synthetic parameters matching Mamba(d_model, d_state=16, d_conv=4, expand=2) shapes.
# MXU-feeding weights are stored pre-transposed and in bf16 (f32 accumulate in-kernel).
# dt_proj's weight is folded (in f32) into the x_proj weight: one matmul instead of two.
# --------------------------------------------------------------------------------------
def init_params(key, d_model, d_state=16, d_conv=4, expand=2):
    d_inner = expand * d_model
    dt_rank = -(-d_model // 16)            # ceil(d_model / 16)
    ks = jax.random.split(key, 8)

    def w(k, shape, scale=0.02):
        return (scale * jax.random.normal(k, shape)).astype(jnp.float32)

    w_in = w(ks[0], (2 * d_inner, d_model))                  # in_proj.weight (bias=False)
    conv_w_pt = w(ks[1], (d_inner, d_conv), 0.2)             # conv1d.weight (groups=d_inner)
    conv_b = w(ks[2], (1, d_inner), 0.1)                     # conv1d.bias
    w_xproj = w(ks[3], (dt_rank + 2 * d_state, d_inner))     # x_proj.weight (bias=False)
    w_dt = w(ks[4], (d_inner, dt_rank), 0.5)                 # dt_proj.weight
    b_dt = w(ks[5], (1, d_inner), 0.1)                       # dt_proj.bias
    A_log_t = jnp.broadcast_to(
        jnp.log(jnp.arange(1, d_state + 1, dtype=jnp.float32))[:, None],
        (d_state, d_inner))                                  # A_log, pre-transposed
    Dp = jnp.ones((1, d_inner), jnp.float32)
    w_out = w(ks[6], (d_model, d_inner))                     # out_proj.weight (bias=False)

    # Fold dt_proj into x_proj (no nonlinearity between them):
    #   dt_pre = u @ W_xproj_dt^T @ W_dt^T  ==  u @ (W_xproj_dt^T @ W_dt^T)
    w_dt_folded_t = jnp.transpose(w_xproj[:dt_rank, :]) @ jnp.transpose(w_dt)  # (d_inner, d_inner)
    w_B_t = jnp.transpose(w_xproj[dt_rank:dt_rank + d_state, :])               # (d_inner, d_state)
    w_C_t = jnp.transpose(w_xproj[dt_rank + d_state:, :])                      # (d_inner, d_state)
    w_xproj_fused_t = jnp.concatenate([w_dt_folded_t, w_B_t, w_C_t], axis=1)   # (d_inner, d_inner+2*d_state)

    bf16 = jnp.bfloat16
    return dict(
        w_in_t=jnp.transpose(w_in).astype(bf16),             # (d_model, 2*d_inner): x|z columns
        conv_w=jnp.transpose(conv_w_pt),                     # (d_conv, d_inner)
        conv_b=conv_b,                                       # (1, d_inner)
        w_xproj_t=w_xproj_fused_t.astype(bf16),              # (d_inner, d_inner+2*d_state)
        b_dt=b_dt,                                           # (1, d_inner)
        A_log_t=jnp.asarray(A_log_t),                        # (d_state, d_inner)
        D=Dp,                                                # (1, d_inner)
        w_out_t=jnp.transpose(w_out).astype(bf16),           # (d_inner, d_model)
        gamma=jnp.ones((1, d_model), jnp.float32),           # BatchNorm1d weight
        beta=jnp.zeros((1, d_model), jnp.float32),           # BatchNorm1d bias
    )


# --------------------------------------------------------------------------------------
# Pure-JAX reference with identical math (same fused weights, same bf16 MXU feeds).
# --------------------------------------------------------------------------------------
def reference(src, params, eps=1e-5):
    B, L, Dm = src.shape
    d_conv, d_inner = params["conv_w"].shape
    d_state = params["A_log_t"].shape[0]
    f32, bf16 = jnp.float32, jnp.bfloat16

    def one(sb):                                             # (L, Dm) f32
        xz = jnp.dot(sb.astype(bf16), params["w_in_t"], preferred_element_type=f32)
        x, z = xz[:, :d_inner], xz[:, d_inner:]
        x_pad = jnp.concatenate([jnp.zeros((d_conv - 1, d_inner), f32), x], axis=0)
        acc = jnp.zeros((L, d_inner), f32)
        for k in range(d_conv):
            acc = acc + x_pad[k:k + L, :] * params["conv_w"][k:k + 1, :]
        u = jax.nn.silu(acc + params["conv_b"])
        dbc = jnp.dot(u.astype(bf16), params["w_xproj_t"], preferred_element_type=f32)
        delta = jax.nn.softplus(dbc[:, :d_inner] + params["b_dt"])
        Bm = dbc[:, d_inner:d_inner + d_state]
        Cm = dbc[:, d_inner + d_state:]
        A = -jnp.exp(params["A_log_t"])
        dA = jnp.exp(delta[:, None, :] * A[None, :, :])
        dBu = (delta * u)[:, None, :] * Bm[:, :, None]
        h = jnp.zeros((d_state, d_inner), f32)
        hs = []
        for t in range(L):
            h = dA[t] * h + dBu[t]
            hs.append(h)
        H = jnp.stack(hs, axis=0)
        y = jnp.sum(H * Cm[:, :, None], axis=1)
        y = (y + u * params["D"]) * jax.nn.silu(z)
        return sb + jnp.dot(y.astype(bf16), params["w_out_t"], preferred_element_type=f32)

    res = jax.vmap(one)(src.astype(f32)).reshape(B * L, Dm)
    mean = jnp.mean(res, axis=0)
    var = jnp.mean((res - mean) ** 2, axis=0)
    out = (res - mean) * jax.lax.rsqrt(var + eps) * params["gamma"][0] + params["beta"][0]
    return out.reshape(B, L, Dm)


if __name__ == "__main__":
    key = jax.random.PRNGKey(0)
    k_src, k_par = jax.random.split(key)

    # q_len=8, d_model=32 -> d_inner=64, d_state=16, d_conv=4, dt_rank=2
    B, L, d_model = 2, 8, 32
    src = jax.random.normal(k_src, (B, L, d_model), dtype=jnp.float32)
    params = init_params(k_par, d_model)

    out = jax.block_until_ready(tsm_encoder_layer(src, params))
    assert out.shape == (B, L, d_model)
    assert bool(jnp.all(jnp.isfinite(out)))

    ref = reference(src, params)
    max_err = float(jnp.max(jnp.abs(out - ref)))
    assert max_err < 2e-3, f"mismatch vs reference: {max_err}"

    print("KERNEL_OK")
</pallas_src>

<mosaic_0001>
module attributes {stable_mosaic.version = 11 : i64} {
  func.func @_mamba_residual_kernel(%arg0: i32, %arg1: memref<1x8x32xf32, #tpu.memory_space<vmem>>, %arg2: memref<32x128xbf16, #tpu.memory_space<vmem>>, %arg3: memref<4x64xf32, #tpu.memory_space<vmem>>, %arg4: memref<1x64xf32, #tpu.memory_space<vmem>>, %arg5: memref<64x96xbf16, #tpu.memory_space<vmem>>, %arg6: memref<1x64xf32, #tpu.memory_space<vmem>>, %arg7: memref<16x64xf32, #tpu.memory_space<vmem>>, %arg8: memref<1x64xf32, #tpu.memory_space<vmem>>, %arg9: memref<64x32xbf16, #tpu.memory_space<vmem>>, %arg10: memref<1x8x32xf32, #tpu.memory_space<vmem>>, %arg11: memref<1x2x32xf32, #tpu.memory_space<vmem>>, %arg12: memref<8x16x64xf32, #tpu.memory_space<vmem>>, %arg13: memref<8x16x64xf32, #tpu.memory_space<vmem>>, %arg14: memref<8x16x64xf32, #tpu.memory_space<vmem>>) attributes {dimension_semantics = [#tpu.dimension_semantics<parallel>], iteration_bounds = array<i64: 2>, scalar_prefetch = 0 : i64, scratch_operands = 3 : i64, tpu.core_type = #tpu.core_type<tc>, window_params = [{transform_indices = @transform_0, window_bounds = array<i64: 1, 8, 32>}, {pipeline_mode = #tpu.pipeline_mode<synchronous>, transform_indices = @transform_1, window_bounds = array<i64: 32, 128>}, {pipeline_mode = #tpu.pipeline_mode<synchronous>, transform_indices = @transform_2, window_bounds = array<i64: 4, 64>}, {pipeline_mode = #tpu.pipeline_mode<synchronous>, transform_indices = @transform_3, window_bounds = array<i64: 1, 64>}, {pipeline_mode = #tpu.pipeline_mode<synchronous>, transform_indices = @transform_4, window_bounds = array<i64: 64, 96>}, {pipeline_mode = #tpu.pipeline_mode<synchronous>, transform_indices = @transform_5, window_bounds = array<i64: 1, 64>}, {pipeline_mode = #tpu.pipeline_mode<synchronous>, transform_indices = @transform_6, window_bounds = array<i64: 16, 64>}, {pipeline_mode = #tpu.pipeline_mode<synchronous>, transform_indices = @transform_7, window_bounds = array<i64: 1, 64>}, {pipeline_mode = #tpu.pipeline_mode<synchronous>, transform_indices = @transform_8, window_bounds = array<i64: 64, 32>}, {transform_indices = @transform_9, window_bounds = array<i64: 1, 8, 32>}, {transform_indices = @transform_10, window_bounds = array<i64: 1, 2, 32>}]} {
    %c0 = arith.constant 0 : index
    %c0_0 = arith.constant 0 : index
    %c0_1 = arith.constant 0 : index
    %0 = vector.load %arg1[%c0, %c0_0, %c0_1] : memref<1x8x32xf32, #tpu.memory_space<vmem>>, vector<1x8x32xf32>
    %1 = vector.shape_cast %0 : vector<1x8x32xf32> to vector<8x32xf32>
    %2 = arith.truncf %1 : vector<8x32xf32> to vector<8x32xbf16>
    %c0_2 = arith.constant 0 : index
    %c0_3 = arith.constant 0 : index
    %3 = vector.load %arg2[%c0_2, %c0_3] : memref<32x128xbf16, #tpu.memory_space<vmem>>, vector<32x128xbf16>
    %cst = arith.constant dense<0.000000e+00> : vector<8x128xf32>
    %4 = tpu.matmul %2, %3, %cst {dimension_numbers = #tpu.dot_dimension_numbers<[1], [0], [0], [1], [0, 0, 1, 1], [], []>} : vector<8x32xbf16>, vector<32x128xbf16>, vector<8x128xf32> -> vector<8x128xf32>
    %5 = vector.extract_strided_slice %4 {offsets = [0, 0], sizes = [8, 64], strides = [1, 1]} : vector<8x128xf32> to vector<8x64xf32>
    %6 = vector.extract_strided_slice %4 {offsets = [0, 64], sizes = [8, 64], strides = [1, 1]} : vector<8x128xf32> to vector<8x64xf32>
    %cst_4 = arith.constant 0.000000e+00 : f32
    %7 = vector.broadcast %cst_4 : f32 to vector<3x64xf32>
    %8 = tpu.concatenate %7, %5 in 0 : vector<3x64xf32>, vector<8x64xf32> -> vector<11x64xf32>
    %cst_5 = arith.constant 0.000000e+00 : f32
    %9 = vector.broadcast %cst_5 : f32 to vector<8x64xf32>
    %10 = vector.extract_strided_slice %8 {offsets = [0, 0], sizes = [8, 64], strides = [1, 1]} : vector<11x64xf32> to vector<8x64xf32>
    %c0_6 = arith.constant 0 : index
    %c0_7 = arith.constant 0 : index
    %11 = vector.load %arg3[%c0_6, %c0_7] : memref<4x64xf32, #tpu.memory_space<vmem>>, vector<1x64xf32>
    %12 = vector.broadcast %11 : vector<1x64xf32> to vector<8x64xf32>
    %13 = arith.mulf %10, %12 : vector<8x64xf32>
    %14 = arith.addf %9, %13 : vector<8x64xf32>
    %15 = vector.extract_strided_slice %8 {offsets = [1, 0], sizes = [8, 64], strides = [1, 1]} : vector<11x64xf32> to vector<8x64xf32>
    %c1 = arith.constant 1 : index
    %c0_8 = arith.constant 0 : index
    %16 = vector.load %arg3[%c1, %c0_8] : memref<4x64xf32, #tpu.memory_space<vmem>>, vector<1x64xf32>
    %17 = vector.broadcast %16 : vector<1x64xf32> to vector<8x64xf32>
    %18 = arith.mulf %15, %17 : vector<8x64xf32>
    %19 = arith.addf %14, %18 : vector<8x64xf32>
    %20 = vector.extract_strided_slice %8 {offsets = [2, 0], sizes = [8, 64], strides = [1, 1]} : vector<11x64xf32> to vector<8x64xf32>
    %c2 = arith.constant 2 : index
    %c0_9 = arith.constant 0 : index
    %21 = vector.load %arg3[%c2, %c0_9] : memref<4x64xf32, #tpu.memory_space<vmem>>, vector<1x64xf32>
    %22 = vector.broadcast %21 : vector<1x64xf32> to vector<8x64xf32>
    %23 = arith.mulf %20, %22 : vector<8x64xf32>
    %24 = arith.addf %19, %23 : vector<8x64xf32>
    %25 = vector.extract_strided_slice %8 {offsets = [3, 0], sizes = [8, 64], strides = [1, 1]} : vector<11x64xf32> to vector<8x64xf32>
    %c3 = arith.constant 3 : index
    %c0_10 = arith.constant 0 : index
    %26 = vector.load %arg3[%c3, %c0_10] : memref<4x64xf32, #tpu.memory_space<vmem>>, vector<1x64xf32>
    %27 = vector.broadcast %26 : vector<1x64xf32> to vector<8x64xf32>
    %28 = arith.mulf %25, %27 : vector<8x64xf32>
    %29 = arith.addf %24, %28 : vector<8x64xf32>
    %c0_11 = arith.constant 0 : index
    %c0_12 = arith.constant 0 : index
    %30 = vector.load %arg4[%c0_11, %c0_12] : memref<1x64xf32, #tpu.memory_space<vmem>>, vector<1x64xf32>
    %31 = vector.broadcast %30 : vector<1x64xf32> to vector<8x64xf32>
    %32 = arith.addf %29, %31 : vector<8x64xf32>
    %33 = arith.negf %32 : vector<8x64xf32>
    %34 = math.exp %33 : vector<8x64xf32>
    %cst_13 = arith.constant 1.000000e+00 : f32
    %35 = vector.broadcast %cst_13 : f32 to vector<8x64xf32>
    %36 = arith.addf %35, %34 : vector<8x64xf32>
    %37 = arith.divf %35, %36 : vector<8x64xf32>
    %38 = arith.mulf %32, %37 : vector<8x64xf32>
    %39 = arith.truncf %38 : vector<8x64xf32> to vector<8x64xbf16>
    %c0_14 = arith.constant 0 : index
    %c0_15 = arith.constant 0 : index
    %40 = vector.load %arg5[%c0_14, %c0_15] : memref<64x96xbf16, #tpu.memory_space<vmem>>, vector<64x96xbf16>
    %cst_16 = arith.constant dense<0.000000e+00> : vector<8x96xf32>
    %41 = tpu.matmul %39, %40, %cst_16 {dimension_numbers = #tpu.dot_dimension_numbers<[1], [0], [0], [1], [0, 0, 1, 1], [], []>} : vector<8x64xbf16>, vector<64x96xbf16>, vector<8x96xf32> -> vector<8x96xf32>
    %42 = vector.extract_strided_slice %41 {offsets = [0, 0], sizes = [8, 64], strides = [1, 1]} : vector<8x96xf32> to vector<8x64xf32>
    %c0_17 = arith.constant 0 : index
    %c0_18 = arith.constant 0 : index
    %43 = vector.load %arg6[%c0_17, %c0_18] : memref<1x64xf32, #tpu.memory_space<vmem>>, vector<1x64xf32>
    %44 = vector.broadcast %43 : vector<1x64xf32> to vector<8x64xf32>
    %45 = arith.addf %42, %44 : vector<8x64xf32>
    %cst_19 = arith.constant 0.000000e+00 : f32
    %46 = vector.broadcast %cst_19 : f32 to vector<8x64xf32>
    %47 = arith.maximumf %45, %46 : vector<8x64xf32>
    %48 = vector.broadcast %cst_19 : f32 to vector<8x64xf32>
    %49 = arith.subf %45, %48 : vector<8x64xf32>
    %50 = arith.cmpf one, %49, %49 : vector<8x64xf32>
    %51 = vector.broadcast %cst_19 : f32 to vector<8x64xf32>
    %52 = arith.addf %45, %51 : vector<8x64xf32>
    %53 = math.absf %49 : vector<8x64xf32>
    %cst_20 = arith.constant 0.000000e+00 : f32
    %54 = vector.broadcast %cst_20 : f32 to vector<8x64xf32>
    %55 = arith.subf %54, %53 : vector<8x64xf32>
    %56 = math.exp %55 : vector<8x64xf32>
    %57 = math.log1p %56 : vector<8x64xf32>
    %58 = arith.addf %47, %57 : vector<8x64xf32>
    %59 = arith.select %50, %52, %58 : vector<8x64xi1>, vector<8x64xf32>
    %60 = vector.extract_strided_slice %41 {offsets = [0, 64], sizes = [8, 16], strides = [1, 1]} : vector<8x96xf32> to vector<8x16xf32>
    %61 = vector.extract_strided_slice %41 {offsets = [0, 80], sizes = [8, 16], strides = [1, 1]} : vector<8x96xf32> to vector<8x16xf32>
    %c0_21 = arith.constant 0 : index
    %c0_22 = arith.constant 0 : index
    %62 = vector.load %arg7[%c0_21, %c0_22] : memref<16x64xf32, #tpu.memory_space<vmem>>, vector<16x64xf32>
    %63 = math.exp %62 : vector<16x64xf32>
    %cst_23 = arith.constant 0.000000e+00 : f32
    %64 = vector.broadcast %cst_23 : f32 to vector<16x64xf32>
    %65 = arith.subf %64, %63 : vector<16x64xf32>
    %66 = vector.shape_cast %59 : vector<8x64xf32> to vector<8x1x64xf32>
    %67 = vector.shape_cast %65 : vector<16x64xf32> to vector<1x16x64xf32>
    %68 = vector.broadcast %66 : vector<8x1x64xf32> to vector<8x16x64xf32>
    %69 = vector.broadcast %67 : vector<1x16x64xf32> to vector<8x16x64xf32>
    %70 = arith.mulf %68, %69 : vector<8x16x64xf32>
    %71 = math.exp %70 : vector<8x16x64xf32>
    %c0_24 = arith.constant 0 : index
    %c0_25 = arith.constant 0 : index
    %c0_26 = arith.constant 0 : index
    %72 = vector.load %arg12[%c0_24, %c0_25, %c0_26] : memref<8x16x64xf32, #tpu.memory_space<vmem>>, vector<8x16x64xf32>
    tpu.vector_store %arg12[%c0_24, %c0_25, %c0_26], %71 {strides = array<i32>} : memref<8x16x64xf32, #tpu.memory_space<vmem>>, vector<8x16x64xf32>,
    %73 = arith.mulf %59, %38 : vector<8x64xf32>
    %74 = vector.shape_cast %73 : vector<8x64xf32> to vector<8x1x64xf32>
    %75 = vector.shape_cast %60 : vector<8x16xf32> to vector<8x16x1xf32>
    %76 = vector.broadcast %74 : vector<8x1x64xf32> to vector<8x16x64xf32>
    %77 = vector.broadcast %75 : vector<8x16x1xf32> to vector<8x16x64xf32>
    %78 = arith.mulf %76, %77 : vector<8x16x64xf32>
    %c0_27 = arith.constant 0 : index
    %c0_28 = arith.constant 0 : index
    %c0_29 = arith.constant 0 : index
    %79 = vector.load %arg13[%c0_27, %c0_28, %c0_29] : memref<8x16x64xf32, #tpu.memory_space<vmem>>, vector<8x16x64xf32>
    tpu.vector_store %arg13[%c0_27, %c0_28, %c0_29], %78 {strides = array<i32>} : memref<8x16x64xf32, #tpu.memory_space<vmem>>, vector<8x16x64xf32>,
    %cst_30 = arith.constant 0.000000e+00 : f32
    %80 = vector.broadcast %cst_30 : f32 to vector<16x64xf32>
    %c0_31 = arith.constant 0 : index
    %c0_32 = arith.constant 0 : index
    %c0_33 = arith.constant 0 : index
    %81 = vector.load %arg12[%c0_31, %c0_32, %c0_33] : memref<8x16x64xf32, #tpu.memory_space<vmem>>, vector<1x16x64xf32>
    %82 = vector.shape_cast %81 : vector<1x16x64xf32> to vector<16x64xf32>
    %83 = arith.mulf %82, %80 : vector<16x64xf32>
    %c0_34 = arith.constant 0 : index
    %c0_35 = arith.constant 0 : index
    %c0_36 = arith.constant 0 : index
    %84 = vector.load %arg13[%c0_34, %c0_35, %c0_36] : memref<8x16x64xf32, #tpu.memory_space<vmem>>, vector<1x16x64xf32>
    %85 = vector.shape_cast %84 : vector<1x16x64xf32> to vector<16x64xf32>
    %86 = arith.addf %83, %85 : vector<16x64xf32>
    %c0_37 = arith.constant 0 : index
    %c0_38 = arith.constant 0 : index
    %c0_39 = arith.constant 0 : index
    %87 = vector.load %arg14[%c0_37, %c0_38, %c0_39] : memref<8x16x64xf32, #tpu.memory_space<vmem>>, vector<1x16x64xf32>
    %88 = vector.shape_cast %87 : vector<1x16x64xf32> to vector<16x64xf32>
    %89 = vector.shape_cast %86 : vector<16x64xf32> to vector<1x16x64xf32>
    tpu.vector_store %arg14[%c0_37, %c0_38, %c0_39], %89 {strides = array<i32>} : memref<8x16x64xf32, #tpu.memory_space<vmem>>, vector<1x16x64xf32>,
    %c1_40 = arith.constant 1 : index
    %c0_41 = arith.constant 0 : index
    %c0_42 = arith.constant 0 : index
    %90 = vector.load %arg12[%c1_40, %c0_41, %c0_42] : memref<8x16x64xf32, #tpu.memory_space<vmem>>, vector<1x16x64xf32>
    %91 = vector.shape_cast %90 : vector<1x16x64xf32> to vector<16x64xf32>
    %92 = arith.mulf %91, %86 : vector<16x64xf32>
    %c1_43 = arith.constant 1 : index
    %c0_44 = arith.constant 0 : index
    %c0_45 = arith.constant 0 : index
    %93 = vector.load %arg13[%c1_43, %c0_44, %c0_45] : memref<8x16x64xf32, #tpu.memory_space<vmem>>, vector<1x16x64xf32>
    %94 = vector.shape_cast %93 : vector<1x16x64xf32> to vector<16x64xf32>
    %95 = arith.addf %92, %94 : vector<16x64xf32>
    %c1_46 = arith.constant 1 : index
    %c0_47 = arith.constant 0 : index
    %c0_48 = arith.constant 0 : index
    %96 = vector.load %arg14[%c1_46, %c0_47, %c0_48] : memref<8x16x64xf32, #tpu.memory_space<vmem>>, vector<1x16x64xf32>
    %97 = vector.shape_cast %96 : vector<1x16x64xf32> to vector<16x64xf32>
    %98 = vector.shape_cast %95 : vector<16x64xf32> to vector<1x16x64xf32>
    tpu.vector_store %arg14[%c1_46, %c0_47, %c0_48], %98 {strides = array<i32>} : memref<8x16x64xf32, #tpu.memory_space<vmem>>, vector<1x16x64xf32>,
    %c2_49 = arith.constant 2 : index
    %c0_50 = arith.constant 0 : index
    %c0_51 = arith.constant 0 : index
    %99 = vector.load %arg12[%c2_49, %c0_50, %c0_51] : memref<8x16x64xf32, #tpu.memory_space<vmem>>, vector<1x16x64xf32>
    %100 = vector.shape_cast %99 : vector<1x16x64xf32> to vector<16x64xf32>
    %101 = arith.mulf %100, %95 : vector<16x64xf32>
    %c2_52 = arith.constant 2 : index
    %c0_53 = arith.constant 0 : index
    %c0_54 = arith.constant 0 : index
    %102 = vector.load %arg13[%c2_52, %c0_53, %c0_54] : memref<8x16x64xf32, #tpu.memory_space<vmem>>, vector<1x16x64xf32>
    %103 = vector.shape_cast %102 : vector<1x16x64xf32> to vector<16x64xf32>
    %104 = arith.addf %101, %103 : vector<16x64xf32>
    %c2_55 = arith.constant 2 : index
    %c0_56 = arith.constant 0 : index
    %c0_57 = arith.constant 0 : index
    %105 = vector.load %arg14[%c2_55, %c0_56, %c0_57] : memref<8x16x64xf32, #tpu.memory_space<vmem>>, vector<1x16x64xf32>
    %106 = vector.shape_cast %105 : vector<1x16x64xf32> to vector<16x64xf32>
    %107 = vector.shape_cast %104 : vector<16x64xf32> to vector<1x16x64xf32>
    tpu.vector_store %arg14[%c2_55, %c0_56, %c0_57], %107 {strides = array<i32>} : memref<8x16x64xf32, #tpu.memory_space<vmem>>, vector<1x16x64xf32>,
    %c3_58 = arith.constant 3 : index
    %c0_59 = arith.constant 0 : index
    %c0_60 = arith.constant 0 : index
    %108 = vector.load %arg12[%c3_58, %c0_59, %c0_60] : memref<8x16x64xf32, #tpu.memory_space<vmem>>, vector<1x16x64xf32>
    %109 = vector.shape_cast %108 : vector<1x16x64xf32> to vector<16x64xf32>
    %110 = arith.mulf %109, %104 : vector<16x64xf32>
    %c3_61 = arith.constant 3 : index
    %c0_62 = arith.constant 0 : index
    %c0_63 = arith.constant 0 : index
    %111 = vector.load %arg13[%c3_61, %c0_62, %c0_63] : memref<8x16x64xf32, #tpu.memory_space<vmem>>, vector<1x16x64xf32>
    %112 = vector.shape_cast %111 : vector<1x16x64xf32> to vector<16x64xf32>
    %113 = arith.addf %110, %112 : vector<16x64xf32>
    %c3_64 = arith.constant 3 : index
    %c0_65 = arith.constant 0 : index
    %c0_66 = arith.constant 0 : index
    %114 = vector.load %arg14[%c3_64, %c0_65, %c0_66] : memref<8x16x64xf32, #tpu.memory_space<vmem>>, vector<1x16x64xf32>
    %115 = vector.shape_cast %114 : vector<1x16x64xf32> to vector<16x64xf32>
    %116 = vector.shape_cast %113 : vector<16x64xf32> to vector<1x16x64xf32>
    tpu.vector_store %arg14[%c3_64, %c0_65, %c0_66], %116 {strides = array<i32>} : memref<8x16x64xf32, #tpu.memory_space<vmem>>, vector<1x16x64xf32>,
    %c4 = arith.constant 4 : index
    %c0_67 = arith.constant 0 : index
    %c0_68 = arith.constant 0 : index
    %117 = vector.load %arg12[%c4, %c0_67, %c0_68] : memref<8x16x64xf32, #tpu.memory_space<vmem>>, vector<1x16x64xf32>
    %118 = vector.shape_cast %117 : vector<1x16x64xf32> to vector<16x64xf32>
    %119 = arith.mulf %118, %113 : vector<16x64xf32>
    %c4_69 = arith.constant 4 : index
    %c0_70 = arith.constant 0 : index
    %c0_71 = arith.constant 0 : index
    %120 = vector.load %arg13[%c4_69, %c0_70, %c0_71] : memref<8x16x64xf32, #tpu.memory_space<vmem>>, vector<1x16x64xf32>
    %121 = vector.shape_cast %120 : vector<1x16x64xf32> to vector<16x64xf32>
    %122 = arith.addf %119, %121 : vector<16x64xf32>
    %c4_72 = arith.constant 4 : index
    %c0_73 = arith.constant 0 : index
    %c0_74 = arith.constant 0 : index
    %123 = vector.load %arg14[%c4_72, %c0_73, %c0_74] : memref<8x16x64xf32, #tpu.memory_space<vmem>>, vector<1x16x64xf32>
    %124 = vector.shape_cast %123 : vector<1x16x64xf32> to vector<16x64xf32>
    %125 = vector.shape_cast %122 : vector<16x64xf32> to vector<1x16x64xf32>
    tpu.vector_store %arg14[%c4_72, %c0_73, %c0_74], %125 {strides = array<i32>} : memref<8x16x64xf32, #tpu.memory_space<vmem>>, vector<1x16x64xf32>,
    %c5 = arith.constant 5 : index
    %c0_75 = arith.constant 0 : index
    %c0_76 = arith.constant 0 : index
    %126 = vector.load %arg12[%c5, %c0_75, %c0_76] : memref<8x16x64xf32, #tpu.memory_space<vmem>>, vector<1x16x64xf32>
    %127 = vector.shape_cast %126 : vector<1x16x64xf32> to vector<16x64xf32>
    %128 = arith.mulf %127, %122 : vector<16x64xf32>
    %c5_77 = arith.constant 5 : index
    %c0_78 = arith.constant 0 : index
    %c0_79 = arith.constant 0 : index
    %129 = vector.load %arg13[%c5_77, %c0_78, %c0_79] : memref<8x16x64xf32, #tpu.memory_space<vmem>>, vector<1x16x64xf32>
    %130 = vector.shape_cast %129 : vector<1x16x64xf32> to vector<16x64xf32>
    %131 = arith.addf %128, %130 : vector<16x64xf32>
    %c5_80 = arith.constant 5 : index
    %c0_81 = arith.constant 0 : index
    %c0_82 = arith.constant 0 : index
    %132 = vector.load %arg14[%c5_80, %c0_81, %c0_82] : memref<8x16x64xf32, #tpu.memory_space<vmem>>, vector<1x16x64xf32>
    %133 = vector.shape_cast %132 : vector<1x16x64xf32> to vector<16x64xf32>
    %134 = vector.shape_cast %131 : vector<16x64xf32> to vector<1x16x64xf32>
    tpu.vector_store %arg14[%c5_80, %c0_81, %c0_82], %134 {strides = array<i32>} : memref<8x16x64xf32, #tpu.memory_space<vmem>>, vector<1x16x64xf32>,
    %c6 = arith.constant 6 : index
    %c0_83 = arith.constant 0 : index
    %c0_84 = arith.constant 0 : index
    %135 = vector.load %arg12[%c6, %c0_83, %c0_84] : memref<8x16x64xf32, #tpu.memory_space<vmem>>, vector<1x16x64xf32>
    %136 = vector.shape_cast %135 : vector<1x16x64xf32> to vector<16x64xf32>
    %137 = arith.mulf %136, %131 : vector<16x64xf32>
    %c6_85 = arith.constant 6 : index
    %c0_86 = arith.constant 0 : index
    %c0_87 = arith.constant 0 : index
    %138 = vector.load %arg13[%c6_85, %c0_86, %c0_87] : memref<8x16x64xf32, #tpu.memory_space<vmem>>, vector<1x16x64xf32>
    %139 = vector.shape_cast %138 : vector<1x16x64xf32> to vector<16x64xf32>
    %140 = arith.addf %137, %139 : vector<16x64xf32>
    %c6_88 = arith.constant 6 : index
    %c0_89 = arith.constant 0 : index
    %c0_90 = arith.constant 0 : index
    %141 = vector.load %arg14[%c6_88, %c0_89, %c0_90] : memref<8x16x64xf32, #tpu.memory_space<vmem>>, vector<1x16x64xf32>
    %142 = vector.shape_cast %141 : vector<1x16x64xf32> to vector<16x64xf32>
    %143 = vector.shape_cast %140 : vector<16x64xf32> to vector<1x16x64xf32>
    tpu.vector_store %arg14[%c6_88, %c0_89, %c0_90], %143 {strides = array<i32>} : memref<8x16x64xf32, #tpu.memory_space<vmem>>, vector<1x16x64xf32>,
    %c7 = arith.constant 7 : index
    %c0_91 = arith.constant 0 : index
    %c0_92 = arith.constant 0 : index
    %144 = vector.load %arg12[%c7, %c0_91, %c0_92] : memref<8x16x64xf32, #tpu.memory_space<vmem>>, vector<1x16x64xf32>
    %145 = vector.shape_cast %144 : vector<1x16x64xf32> to vector<16x64xf32>
    %146 = arith.mulf %145, %140 : vector<16x64xf32>
    %c7_93 = arith.constant 7 : index
    %c0_94 = arith.constant 0 : index
    %c0_95 = arith.constant 0 : index
    %147 = vector.load %arg13[%c7_93, %c0_94, %c0_95] : memref<8x16x64xf32, #tpu.memory_space<vmem>>, vector<1x16x64xf32>
    %148 = vector.shape_cast %147 : vector<1x16x64xf32> to vector<16x64xf32>
    %149 = arith.addf %146, %148 : vector<16x64xf32>
    %c7_96 = arith.constant 7 : index
    %c0_97 = arith.constant 0 : index
    %c0_98 = arith.constant 0 : index
    %150 = vector.load %arg14[%c7_96, %c0_97, %c0_98] : memref<8x16x64xf32, #tpu.memory_space<vmem>>, vector<1x16x64xf32>
    %151 = vector.shape_cast %150 : vector<1x16x64xf32> to vector<16x64xf32>
    %152 = vector.shape_cast %149 : vector<16x64xf32> to vector<1x16x64xf32>
    tpu.vector_store %arg14[%c7_96, %c0_97, %c0_98], %152 {strides = array<i32>} : memref<8x16x64xf32, #tpu.memory_space<vmem>>, vector<1x16x64xf32>,
    %c0_99 = arith.constant 0 : index
    %c0_100 = arith.constant 0 : index
    %c0_101 = arith.constant 0 : index
    %153 = vector.load %arg14[%c0_99, %c0_100, %c0_101] : memref<8x16x64xf32, #tpu.memory_space<vmem>>, vector<8x16x64xf32>
    %154 = vector.shape_cast %61 : vector<8x16xf32> to vector<8x16x1xf32>
    %155 = vector.broadcast %154 : vector<8x16x1xf32> to vector<8x16x64xf32>
    %156 = arith.mulf %153, %155 : vector<8x16x64xf32>
    %cst_102 = arith.constant dense<0.000000e+00> : vector<8x64xf32>
    %157 = vector.multi_reduction <add>, %156, %cst_102 [1] : vector<8x16x64xf32> to vector<8x64xf32>
    %c0_103 = arith.constant 0 : index
    %c0_104 = arith.constant 0 : index
    %158 = vector.load %arg8[%c0_103, %c0_104] : memref<1x64xf32, #tpu.memory_space<vmem>>, vector<1x64xf32>
    %159 = vector.broadcast %158 : vector<1x64xf32> to vector<8x64xf32>
    %160 = arith.mulf %38, %159 : vector<8x64xf32>
    %161 = arith.addf %157, %160 : vector<8x64xf32>
    %162 = arith.negf %6 : vector<8x64xf32>
    %163 = math.exp %162 : vector<8x64xf32>
    %cst_105 = arith.constant 1.000000e+00 : f32
    %164 = vector.broadcast %cst_105 : f32 to vector<8x64xf32>
    %165 = arith.addf %164, %163 : vector<8x64xf32>
    %166 = arith.divf %164, %165 : vector<8x64xf32>
    %167 = arith.mulf %6, %166 : vector<8x64xf32>
    %168 = arith.mulf %161, %167 : vector<8x64xf32>
    %169 = arith.truncf %168 : vector<8x64xf32> to vector<8x64xbf16>
    %c0_106 = arith.constant 0 : index
    %c0_107 = arith.constant 0 : index
    %170 = vector.load %arg9[%c0_106, %c0_107] : memref<64x32xbf16, #tpu.memory_space<vmem>>, vector<64x32xbf16>
    %cst_108 = arith.constant dense<0.000000e+00> : vector<8x32xf32>
    %171 = tpu.matmul %169, %170, %cst_108 {dimension_numbers = #tpu.dot_dimension_numbers<[1], [0], [0], [1], [0, 0, 1, 1], [], []>} : vector<8x64xbf16>, vector<64x32xbf16>, vector<8x32xf32> -> vector<8x32xf32>
    %172 = arith.addf %1, %171 : vector<8x32xf32>
    %c0_109 = arith.constant 0 : index
    %c0_110 = arith.constant 0 : index
    %c0_111 = arith.constant 0 : index
    %173 = vector.load %arg10[%c0_109, %c0_110, %c0_111] : memref<1x8x32xf32, #tpu.memory_space<vmem>>, vector<1x8x32xf32>
    %174 = vector.shape_cast %173 : vector<1x8x32xf32> to vector<8x32xf32>
    %175 = vector.shape_cast %172 : vector<8x32xf32> to vector<1x8x32xf32>
    tpu.vector_store %arg10[%c0_109, %c0_110, %c0_111], %175 {strides = array<i32>} : memref<1x8x32xf32, #tpu.memory_space<vmem>>, vector<1x8x32xf32>,
    %cst_112 = arith.constant dense<0.000000e+00> : vector<32xf32>
    %176 = vector.multi_reduction <add>, %172, %cst_112 [0] : vector<8x32xf32> to vector<32xf32>
    %177 = vector.shape_cast %176 : vector<32xf32> to vector<1x32xf32>
    %178 = arith.mulf %172, %172 : vector<8x32xf32>
    %cst_113 = arith.constant dense<0.000000e+00> : vector<32xf32>
    %179 = vector.multi_reduction <add>, %178, %cst_113 [0] : vector<8x32xf32> to vector<32xf32>
    %180 = vector.shape_cast %179 : vector<32xf32> to vector<1x32xf32>
    %181 = tpu.concatenate %177, %180 in 0 : vector<1x32xf32>, vector<1x32xf32> -> vector<2x32xf32>
    %c0_114 = arith.constant 0 : index
    %c0_115 = arith.constant 0 : index
    %c0_116 = arith.constant 0 : index
    %182 = vector.load %arg11[%c0_114, %c0_115, %c0_116] : memref<1x2x32xf32, #tpu.memory_space<vmem>>, vector<1x2x32xf32>
    %183 = vector.shape_cast %182 : vector<1x2x32xf32> to vector<2x32xf32>
    %184 = vector.shape_cast %181 : vector<2x32xf32> to vector<1x2x32xf32>
    tpu.vector_store %arg11[%c0_114, %c0_115, %c0_116], %184 {strides = array<i32>} : memref<1x2x32xf32, #tpu.memory_space<vmem>>, vector<1x2x32xf32>,
    return
  }
  func.func @transform_0(%arg0: i32) -> (i32, i32, i32) {
    %c0_i32 = arith.constant 0 : i32
    %c0_i32_0 = arith.constant 0 : i32
    %c0_i32_1 = arith.constant 0 : i32
    return %arg0, %c0_i32, %c0_i32_0 : i32, i32, i32
  }
  func.func @transform_1(%arg0: i32) -> (i32, i32) {
    %c0_i32 = arith.constant 0 : i32
    %c0_i32_0 = arith.constant 0 : i32
    %c0_i32_1 = arith.constant 0 : i32
    return %c0_i32, %c0_i32_0 : i32, i32
  }
  func.func @transform_2(%arg0: i32) -> (i32, i32) {
    %c0_i32 = arith.constant 0 : i32
    %c0_i32_0 = arith.constant 0 : i32
    %c0_i32_1 = arith.constant 0 : i32
    return %c0_i32, %c0_i32_0 : i32, i32
  }
  func.func @transform_3(%arg0: i32) -> (i32, i32) {
    %c0_i32 = arith.constant 0 : i32
    %c0_i32_0 = arith.constant 0 : i32
    %c0_i32_1 = arith.constant 0 : i32
    return %c0_i32, %c0_i32_0 : i32, i32
  }
  func.func @transform_4(%arg0: i32) -> (i32, i32) {
    %c0_i32 = arith.constant 0 : i32
    %c0_i32_0 = arith.constant 0 : i32
    %c0_i32_1 = arith.constant 0 : i32
    return %c0_i32, %c0_i32_0 : i32, i32
  }
  func.func @transform_5(%arg0: i32) -> (i32, i32) {
    %c0_i32 = arith.constant 0 : i32
    %c0_i32_0 = arith.constant 0 : i32
    %c0_i32_1 = arith.constant 0 : i32
    return %c0_i32, %c0_i32_0 : i32, i32
  }
  func.func @transform_6(%arg0: i32) -> (i32, i32) {
    %c0_i32 = arith.constant 0 : i32
    %c0_i32_0 = arith.constant 0 : i32
    %c0_i32_1 = arith.constant 0 : i32
    return %c0_i32, %c0_i32_0 : i32, i32
  }
  func.func @transform_7(%arg0: i32) -> (i32, i32) {
    %c0_i32 = arith.constant 0 : i32
    %c0_i32_0 = arith.constant 0 : i32
    %c0_i32_1 = arith.constant 0 : i32
    return %c0_i32, %c0_i32_0 : i32, i32
  }
  func.func @transform_8(%arg0: i32) -> (i32, i32) {
    %c0_i32 = arith.constant 0 : i32
    %c0_i32_0 = arith.constant 0 : i32
    %c0_i32_1 = arith.constant 0 : i32
    return %c0_i32, %c0_i32_0 : i32, i32
  }
  func.func @transform_9(%arg0: i32) -> (i32, i32, i32) {
    %c0_i32 = arith.constant 0 : i32
    %c0_i32_0 = arith.constant 0 : i32
    %c0_i32_1 = arith.constant 0 : i32
    return %arg0, %c0_i32, %c0_i32_0 : i32, i32, i32
  }
  func.func @transform_10(%arg0: i32) -> (i32, i32, i32) {
    %c0_i32 = arith.constant 0 : i32
    %c0_i32_0 = arith.constant 0 : i32
    %c0_i32_1 = arith.constant 0 : i32
    return %arg0, %c0_i32, %c0_i32_0 : i32, i32, i32
  }
}

module attributes {stable_mosaic.version = 11 : i64} {
  func.func @_bn_apply_kernel(%arg0: i32, %arg1: memref<1x8x32xf32, #tpu.memory_space<vmem>>, %arg2: memref<1x32xf32, #tpu.memory_space<vmem>>, %arg3: memref<1x32xf32, #tpu.memory_space<vmem>>, %arg4: memref<1x8x32xf32, #tpu.memory_space<vmem>>) attributes {dimension_semantics = [#tpu.dimension_semantics<parallel>], iteration_bounds = array<i64: 2>, scalar_prefetch = 0 : i64, scratch_operands = 0 : i64, tpu.core_type = #tpu.core_type<tc>, window_params = [{transform_indices = @transform_0, window_bounds = array<i64: 1, 8, 32>}, {pipeline_mode = #tpu.pipeline_mode<synchronous>, transform_indices = @transform_1, window_bounds = array<i64: 1, 32>}, {pipeline_mode = #tpu.pipeline_mode<synchronous>, transform_indices = @transform_2, window_bounds = array<i64: 1, 32>}, {transform_indices = @transform_3, window_bounds = array<i64: 1, 8, 32>}]} {
    %c0 = arith.constant 0 : index
    %c0_0 = arith.constant 0 : index
    %c0_1 = arith.constant 0 : index
    %0 = vector.load %arg1[%c0, %c0_0, %c0_1] : memref<1x8x32xf32, #tpu.memory_space<vmem>>, vector<1x8x32xf32>
    %1 = vector.shape_cast %0 : vector<1x8x32xf32> to vector<8x32xf32>
    %c0_2 = arith.constant 0 : index
    %c0_3 = arith.constant 0 : index
    %2 = vector.load %arg2[%c0_2, %c0_3] : memref<1x32xf32, #tpu.memory_space<vmem>>, vector<1x32xf32>
    %3 = vector.broadcast %2 : vector<1x32xf32> to vector<8x32xf32>
    %4 = arith.mulf %1, %3 : vector<8x32xf32>
    %c0_4 = arith.constant 0 : index
    %c0_5 = arith.constant 0 : index
    %5 = vector.load %arg3[%c0_4, %c0_5] : memref<1x32xf32, #tpu.memory_space<vmem>>, vector<1x32xf32>
    %6 = vector.broadcast %5 : vector<1x32xf32> to vector<8x32xf32>
    %7 = arith.addf %4, %6 : vector<8x32xf32>
    %c0_6 = arith.constant 0 : index
    %c0_7 = arith.constant 0 : index
    %c0_8 = arith.constant 0 : index
    %8 = vector.load %arg4[%c0_6, %c0_7, %c0_8] : memref<1x8x32xf32, #tpu.memory_space<vmem>>, vector<1x8x32xf32>
    %9 = vector.shape_cast %8 : vector<1x8x32xf32> to vector<8x32xf32>
    %10 = vector.shape_cast %7 : vector<8x32xf32> to vector<1x8x32xf32>
    tpu.vector_store %arg4[%c0_6, %c0_7, %c0_8], %10 {strides = array<i32>} : memref<1x8x32xf32, #tpu.memory_space<vmem>>, vector<1x8x32xf32>,
    return
  }
  func.func @transform_0(%arg0: i32) -> (i32, i32, i32) {
    %c0_i32 = arith.constant 0 : i32
    %c0_i32_0 = arith.constant 0 : i32
    %c0_i32_1 = arith.constant 0 : i32
    return %arg0, %c0_i32, %c0_i32_0 : i32, i32, i32
  }
  func.func @transform_1(%arg0: i32) -> (i32, i32) {
    %c0_i32 = arith.constant 0 : i32
    %c0_i32_0 = arith.constant 0 : i32
    %c0_i32_1 = arith.constant 0 : i32
    return %c0_i32, %c0_i32_0 : i32, i32
  }
  func.func @transform_2(%arg0: i32) -> (i32, i32) {
    %c0_i32 = arith.constant 0 : i32
    %c0_i32_0 = arith.constant 0 : i32
    %c0_i32_1 = arith.constant 0 : i32
    return %c0_i32, %c0_i32_0 : i32, i32
  }
  func.func @transform_3(%arg0: i32) -> (i32, i32, i32) {
    %c0_i32 = arith.constant 0 : i32
    %c0_i32_0 = arith.constant 0 : i32
    %c0_i32_1 = arith.constant 0 : i32
    return %arg0, %c0_i32, %c0_i32_0 : i32, i32, i32
  }
}

</mosaic_0001>

<llo_original>
// kernel: tsm_encoder_layer.3
$region0: #{tsm_encoder_layer.3}
  #allocation0 [shape = 'u32[]', space=smem, size = 0x4, offset = 0x4, fixed_abs, tag = 'smem constant byte address 0x4 - core index']
  #allocation1 [shape = 'u32[72,128]{1,0:T(1,128)}', space=vmem, size = 0x9000, scoped, tag = 'internal scratch']
  %s0 = inlined_call_operand.vmem [shape: f32[2,8,32], index: 0, kind: input, shape index: {}]
  %s1 = inlined_call_operand.vmem [shape: f32[1,32], index: 1, kind: input, shape index: {}]
  %s2 = inlined_call_operand.vmem [shape: f32[1,32], index: 2, kind: input, shape index: {}]
  %s3 = inlined_call_operand.hbm [shape: f32[2,8,32], index: 3, kind: output, shape index: {}]
  %s4 = sld [smem:[#allocation0]]
  $region45: #{tsm_encoder_layer.3} parent=0
    _
  %s6 = ssub.s32 1, %s4
  %s7 = scalar_select 0, %s6, %s4
  $region1: #{tsm_encoder_layer.3} parent=0
    #allocation2 [shape = 'u8[8192]{0}', space=vmem, size = 0x2000, scoped, tag = 'output window, operand 0']
    #allocation3 [shape = 's32[2]{0}', space=sflag, size = 0x8, scoped, tag = 'scoped memory for tsm_encoder_layer.3']
    %8 = vsyncpa [#allocation3], 0
    %s9 = scalar_lea.sflag [#allocation3], 1
    %10 = vsyncpa %s9, 0
    loop: start=0, step=1, limit=4
    $region2: #{tsm_encoder_layer.3} parent=1 // loop_pre_header
      _
    $region3: #{tsm_encoder_layer.3} parent=1 // loop_header
      %s12 = sphi 0, %s16
      %p13 = scmp.ge.s32.totalorder %s12, 4
      %s22 = sphi 0, %s24
      %s25 = sphi 0, %s22
      %s26 = sphi 0, %s25
      %s42 = sphi 0, %s26
      %s46 = sphi 0, %s46
      %s48 = sphi 0, %s46
      %s49 = sphi 0, %s48
      %s63 = sphi 0, %s49
      %s67 = sphi 0, %s67
      %s69 = sphi 0, %s67
      %s70 = sphi 0, %s69
      %s84 = sphi 0, %s70
      %s90 = sphi 0, %s92
      %s93 = sphi 0, %s90
      %s94 = sphi 0, %s93
      %s110 = sphi 0, %s94
    $region4: #{tsm_encoder_layer.3} parent=1 // loop_header_branch
      %15 = sbr.rel (%p13) target = $region8
    $region5: #{tsm_encoder_layer.3} parent=1 // loop_body
      %s17 = ssub.s32 %s12, 1
      %s18 = ssub.s32 %s12, 2
      %s19 = sadd.s32 %s12, 1
      %s20 = ssub.s32 %s12, %s19
      %p21 = scmp.eq.s32.totalorder %s20, 0
      %s23 = sadd.s32 %s22, 1
      %s24 = scalar_select %p21, %s22, %s23
      %p27 = pneg %p21
      %p28 = scmp.eq.s32.totalorder %s12, 1
      %p29 = por %p27, %p28
      %p30 = scmp.ne.s32.totalorder %s22, %s25
      %p31 = scmp.eq.s32.totalorder %s12, 0
      %p32 = por %p30, %p31
      %p33 = scmp.ne.s32.totalorder %s22, %s25
      %p34 = scmp.eq.s32.totalorder %s17, 1
      %p35 = por %p33, %p34
      %p36 = scmp.ne.s32.totalorder %s25, %s26
      %p37 = scmp.eq.s32.totalorder %s17, 0
      %p38 = por %p36, %p37
      %p39 = scmp.ne.s32.totalorder %s25, %s26
      %p40 = scmp.eq.s32.totalorder %s18, 1
      %p41 = por %p39, %p40
      %p43 = scmp.ne.s32.totalorder %s26, %s42
      %p44 = scmp.eq.s32.totalorder %s18, 0
      %p45 = por %p43, %p44
      %s47 = sadd.s32 %s46, 1
      %p50 = scmp.eq.s32.totalorder %s12, 1
      %p51 = scmp.ne.s32.totalorder %s46, %s48
      %p52 = scmp.eq.s32.totalorder %s12, 0
      %p53 = por %p51, %p52
      %p54 = scmp.ne.s32.totalorder %s46, %s48
      %p55 = scmp.eq.s32.totalorder %s17, 1
      %p56 = por %p54, %p55
      %p57 = scmp.ne.s32.totalorder %s48, %s49
      %p58 = scmp.eq.s32.totalorder %s17, 0
      %p59 = por %p57, %p58
      %p60 = scmp.ne.s32.totalorder %s48, %s49
      %p61 = scmp.eq.s32.totalorder %s18, 1
      %p62 = por %p60, %p61
      %p64 = scmp.ne.s32.totalorder %s49, %s63
      %p65 = scmp.eq.s32.totalorder %s18, 0
      %p66 = por %p64, %p65
      %s68 = sadd.s32 %s67, 1
      %p71 = scmp.eq.s32.totalorder %s12, 1
      %p72 = scmp.ne.s32.totalorder %s67, %s69
      %p73 = scmp.eq.s32.totalorder %s12, 0
      %p74 = por %p72, %p73
      %p75 = scmp.ne.s32.totalorder %s67, %s69
      %p76 = scmp.eq.s32.totalorder %s17, 1
      %p77 = por %p75, %p76
      %p78 = scmp.ne.s32.totalorder %s69, %s70
      %p79 = scmp.eq.s32.totalorder %s17, 0
      %p80 = por %p78, %p79
      %p81 = scmp.ne.s32.totalorder %s69, %s70
      %p82 = scmp.eq.s32.totalorder %s18, 1
      %p83 = por %p81, %p82
      %p85 = scmp.ne.s32.totalorder %s70, %s84
      %p86 = scmp.eq.s32.totalorder %s18, 0
      %p87 = por %p85, %p86
      %s88 = ssub.s32 %s12, %s19
      %p89 = scmp.eq.s32.totalorder %s88, 0
      %s91 = sadd.s32 %s90, 1
      %s92 = scalar_select %p89, %s90, %s91
      %p95 = pneg %p89
      %p96 = scmp.eq.s32.totalorder %s12, 1
      %p97 = por %p95, %p96
      %p98 = scmp.ne.s32.totalorder %s90, %s93
      %p99 = scmp.eq.s32.totalorder %s12, 0
      %p100 = por %p98, %p99
      %p101 = scmp.ne.s32.totalorder %s90, %s93
      %p102 = scmp.eq.s32.totalorder %s17, 1
      %p103 = por %p101, %p102
      %p104 = scmp.ne.s32.totalorder %s93, %s94
      %p105 = scmp.eq.s32.totalorder %s17, 0
      %p106 = por %p104, %p105
      %p107 = scmp.ne.s32.totalorder %s93, %s94
      %p108 = scmp.eq.s32.totalorder %s18, 1
      %p109 = por %p107, %p108
      %p111 = scmp.ne.s32.totalorder %s94, %s110
      %p112 = scmp.eq.s32.totalorder %s18, 0
      %p113 = por %p111, %p112
      %p114 = scmp.le.s32.totalorder 1, %s12
      %p115 = scmp.lt.s32.totalorder %s12, 3
      %p116 = pnand %p114, %p115
      %p117 = pneg %p116
      // Predicated region
      $region9: #{tsm_encoder_layer.3} parent=5 // pred_check
        _
      $region10: #{tsm_encoder_layer.3} parent=5 // pred_check_branch
        %119 = sbr.rel (%p116) target = $region12
      $region11: #{tsm_encoder_layer.3} parent=5 // pred_region
        %s120 = ssub.s32 %s12, 1
        // Predicated region
        $region13: #{tsm_encoder_layer.3} parent=11 // pred_check
          %p121 = pneg %p59
        $region14: #{tsm_encoder_layer.3} parent=11 // pred_check_branch
          %123 = sbr.rel (%p121) target = $region16
        $region15: #{tsm_encoder_layer.3} parent=11 // pred_region
          _
        $region16: #{tsm_encoder_layer.3} parent=11 // pred_fallthru
          _
        // Predicated region
        $region17: #{tsm_encoder_layer.3} parent=11 // pred_check
          %p124 = pneg %p80
        $region18: #{tsm_encoder_layer.3} parent=11 // pred_check_branch
          %126 = sbr.rel (%p124) target = $region20
        $region19: #{tsm_encoder_layer.3} parent=11 // pred_region
          _
        $region20: #{tsm_encoder_layer.3} parent=11 // pred_fallthru
          _
      $region12: #{tsm_encoder_layer.3} parent=5 // pred_fallthru
        _
      %p127 = scmp.lt.s32.totalorder %s12, 2
      // Predicated region
      $region21: #{tsm_encoder_layer.3} parent=5 // pred_check
        %p128 = pneg %p127
      $region22: #{tsm_encoder_layer.3} parent=5 // pred_check_branch
        %130 = sbr.rel (%p128) target = $region24
      $region23: #{tsm_encoder_layer.3} parent=5 // pred_region
        // Predicated region
        $region25: #{tsm_encoder_layer.3} parent=23 // pred_check
          %p131 = pneg %p32
        $region26: #{tsm_encoder_layer.3} parent=23 // pred_check_branch
          %133 = sbr.rel (%p131) target = $region28
        $region27: #{tsm_encoder_layer.3} parent=23 // pred_region
          %p134 = scmp.lt.s32.totalorder %s12, 1
          %s135 = scalar_select %p134, %s12, 1
          %s136 = smul.addr %s135, 8
          %s137 = scalar_lea.vmem %s0, %s136
        $region28: #{tsm_encoder_layer.3} parent=23 // pred_fallthru
          _
      $region24: #{tsm_encoder_layer.3} parent=5 // pred_fallthru
        _
      %p138 = scmp.le.s32.totalorder 1, %s12
      %p139 = scmp.lt.s32.totalorder %s12, 3
      %p140 = pnand %p138, %p139
      %p141 = pneg %p140
      // Predicated region
      $region29: #{tsm_encoder_layer.3} parent=5 // pred_check
        _
      $region30: #{tsm_encoder_layer.3} parent=5 // pred_check_branch
        %143 = sbr.rel (%p140) target = $region32
      $region31: #{tsm_encoder_layer.3} parent=5 // pred_region
        %s144 = ssub.s32 %s12, 1
        %p145 = scmp.lt.s32.totalorder %s17, 1
        %s146 = scalar_select %p145, %s17, 1
        %s147 = smul.addr %s146, 8
        %s148 = scalar_lea.vmem %s0, %s147
        %p149 = pneg %p38
        %p150 = pneg %p35
        %p151 = pneg %p59
        %p152 = pneg %p56
        %p153 = pneg %p80
        %p154 = pneg %p77
        %p155 = pneg %p106
        %p156 = pneg %p103
        %s157 = sand.u32 %s93, 1
        %s158 = scalar_lea.sflag [#allocation3], %s157
        %s159 = sand.u32 %s93, 1
        %s160 = smul.addr %s159, 8
        %s161 = scalar_lea.vmem [#allocation2], %s160
        %p162 = scmp.lt.s32.totalorder %s17, 1
        %s163 = scalar_select %p162, %s17, 1
        %s164 = smul.addr %s163, 8
        %s165 = scalar_lea.vmem %s0, %s164
        %v166 = vld [vmem:[%s165] sm:$0xff]
        %v167 = vld [vmem:[%s1] sm:$0x1]
        %v169 = vperm.slane %v167, 0
        %v171 = vmul.f32 %v166, %v169
        %v172 = vld [vmem:[%s2] sm:$0x1]
        %v174 = vperm.slane %v172, 0
        %v176 = vadd.f32 %v171, %v174
        %vm177 = vcmask 261120
        %178 = vst.msk [vmem:[%s161] sm:$0xff] %vm177, %v176
        %s179 = sand.u32 %s93, 1
        %s180 = scalar_lea.sflag [#allocation3], %s179
        %s181 = sand.u32 %s93, 1
        %s182 = smul.addr %s181, 8
        %s183 = scalar_lea.vmem [#allocation2], %s182
        // Predicated region
        $region33: #{tsm_encoder_layer.3} parent=31 // pred_check
          %p184 = pneg %p103
        $region34: #{tsm_encoder_layer.3} parent=31 // pred_check_branch
          %186 = sbr.rel (%p184) target = $region36
        $region35: #{tsm_encoder_layer.3} parent=31 // pred_region
          %188 = vsyncadd %s180, 0
          %s189 = smul.addr %s17, 8
          %s190 = scalar_lea.hbm %s3, %s189
          %s192 = sshll.u32 %s183, 4
          %s193 = int_to_ptr.vmem [resolvable:$true] %s192
          %s194 = sshll.u32 %s190, 4
          %s195 = int_to_ptr.hbm [resolvable:$true] %s194
          %197 = dma.vmem_to_hbm [thread:$0]  %s193, 128, %s195, %s180
        $region36: #{tsm_encoder_layer.3} parent=31 // pred_fallthru
          _
      $region32: #{tsm_encoder_layer.3} parent=5 // pred_fallthru
        _
      %p198 = scmp.le.s32.totalorder 2, %s12
      // Predicated region
      $region37: #{tsm_encoder_layer.3} parent=5 // pred_check
        %p199 = pneg %p198
      $region38: #{tsm_encoder_layer.3} parent=5 // pred_check_branch
        %201 = sbr.rel (%p199) target = $region40
      $region39: #{tsm_encoder_layer.3} parent=5 // pred_region
        %s202 = ssub.s32 %s12, 2
        // Predicated region
        $region41: #{tsm_encoder_layer.3} parent=39 // pred_check
          %p203 = pneg %p109
        $region42: #{tsm_encoder_layer.3} parent=39 // pred_check_branch
          %205 = sbr.rel (%p203) target = $region44
        $region43: #{tsm_encoder_layer.3} parent=39 // pred_region
          %s206 = sand.u32 %s94, 1
          %s207 = scalar_lea.sflag [#allocation3], %s206
          %s208 = sand.u32 %s94, 1
          %s209 = smul.addr %s208, 8
          %s210 = scalar_lea.vmem [#allocation2], %s209
          %212 = dma.done %s207, 128
        $region44: #{tsm_encoder_layer.3} parent=39 // pred_fallthru
          _
      $region40: #{tsm_encoder_layer.3} parent=5 // pred_fallthru
        _
    $region6: #{tsm_encoder_layer.3} parent=1 // loop_footer
      %s16 = sadd.s32 1, %s12
    $region7: #{tsm_encoder_layer.3} parent=1 // loop_footer_branch
      %11 = sbr.rel target = $region3
    $region8: #{tsm_encoder_layer.3} parent=1 // loop_exit
      _
    %213 = vsyncpa [#allocation3], 1
    %s214 = scalar_lea.sflag [#allocation3], 1
    %215 = vsyncpa %s214, 1

// kernel: tsm_encoder_layer.2
$region0: #{tsm_encoder_layer.2}
  #allocation0 [shape = 'u32[]', space=smem, size = 0x4, offset = 0x4, fixed_abs, tag = 'smem constant byte address 0x4 - core index']
  #allocation1 [shape = 'u32[72,128]{1,0:T(1,128)}', space=vmem, size = 0x9000, scoped, tag = 'internal scratch']
  #allocation2 [shape = 'f32[8,16,64]{2,1,0:T(8,128)}', space=vmem, size = 0x10000, scoped, tag = 'scratch operand']
  #allocation3 [shape = 'f32[8,16,64]{2,1,0:T(8,128)}', space=vmem, size = 0x10000, scoped, tag = 'scratch operand']
  #allocation4 [shape = 'f32[8,16,64]{2,1,0:T(8,128)}', space=vmem, size = 0x10000, scoped, tag = 'scratch operand']
  %s0 = inlined_call_operand.vmem [shape: f32[2,8,32], index: 0, kind: input, shape index: {}]
  %s1 = inlined_call_operand.hbm [shape: bf16[32,128], index: 1, kind: input, shape index: {}]
  %s2 = inlined_call_operand.vmem [shape: f32[4,64], index: 2, kind: input, shape index: {}]
  %s3 = inlined_call_operand.vmem [shape: f32[1,64], index: 3, kind: input, shape index: {}]
  %s4 = inlined_call_operand.vmem [shape: bf16[64,96], index: 4, kind: input, shape index: {}]
  %s5 = inlined_call_operand.vmem [shape: f32[1,64], index: 5, kind: input, shape index: {}]
  %s6 = inlined_call_operand.hbm [shape: f32[16,64], index: 6, kind: input, shape index: {}]
  %s7 = inlined_call_operand.vmem [shape: f32[1,64], index: 7, kind: input, shape index: {}]
  %s8 = inlined_call_operand.vmem [shape: bf16[64,32], index: 8, kind: input, shape index: {}]
  %s9 = inlined_call_operand.vmem [shape: f32[2,8,32], index: 9, kind: output, shape index: {0}]
  %s10 = inlined_call_operand.vmem [shape: f32[2,2,32], index: 10, kind: output, shape index: {1}]
  %11 = xla_tuple %s9, %s10
  %s12 = sld [smem:[#allocation0]]
  $region85: #{tsm_encoder_layer.2} parent=0
    _
  %s14 = ssub.s32 1, %s12
  %s15 = scalar_select 0, %s14, %s12
  $region1: #{tsm_encoder_layer.2} parent=0
    #allocation5 [shape = 'u8[8192]{0}', space=vmem, size = 0x2000, scoped, tag = 'input window, operand 1, single buffered']
    #allocation6 [shape = 's32[2]{0}', space=sflag, size = 0x8, scoped, tag = 'scoped memory for tsm_encoder_layer.2']
    #allocation7 [shape = 'u8[8192]{0}', space=vmem, size = 0x2000, scoped, tag = 'input window, operand 6, single buffered']
    #allocation8 [shape = 's32[1]{0}', space=sflag, size = 0x4, scoped, tag = 'scoped memory for tsm_encoder_layer.2']
    %16 = vsyncpa [#allocation6], 0
    %17 = vsyncpa [#allocation8], 0
    loop: start=0, step=1, limit=4
    $region2: #{tsm_encoder_layer.2} parent=1 // loop_pre_header
      _
    $region3: #{tsm_encoder_layer.2} parent=1 // loop_header
      %s19 = sphi 0, %s23
      %p20 = scmp.ge.s32.totalorder %s19, 4
      %s29 = sphi 0, %s31
      %s32 = sphi 0, %s29
      %s33 = sphi 0, %s32
      %s49 = sphi 0, %s33
      %s53 = sphi 0, %s53
      %s55 = sphi 0, %s53
      %s56 = sphi 0, %s55
      %s70 = sphi 0, %s56
      %s74 = sphi 0, %s74
      %s76 = sphi 0, %s74
      %s77 = sphi 0, %s76
      %s91 = sphi 0, %s77
      %s95 = sphi 0, %s95
      %s97 = sphi 0, %s95
      %s98 = sphi 0, %s97
      %s112 = sphi 0, %s98
      %s116 = sphi 0, %s116
      %s118 = sphi 0, %s116
      %s119 = sphi 0, %s118
      %s133 = sphi 0, %s119
      %s137 = sphi 0, %s137
      %s139 = sphi 0, %s137
      %s140 = sphi 0, %s139
      %s154 = sphi 0, %s140
      %s158 = sphi 0, %s158
      %s160 = sphi 0, %s158
      %s161 = sphi 0, %s160
      %s175 = sphi 0, %s161
      %s179 = sphi 0, %s179
      %s181 = sphi 0, %s179
      %s182 = sphi 0, %s181
      %s196 = sphi 0, %s182
      %s200 = sphi 0, %s200
      %s202 = sphi 0, %s200
      %s203 = sphi 0, %s202
      %s217 = sphi 0, %s203
      %s223 = sphi 0, %s225
      %s226 = sphi 0, %s223
      %s227 = sphi 0, %s226
      %s243 = sphi 0, %s227
      %s249 = sphi 0, %s251
      %s252 = sphi 0, %s249
      %s253 = sphi 0, %s252
      %s269 = sphi 0, %s253
    $region4: #{tsm_encoder_layer.2} parent=1 // loop_header_branch
      %22 = sbr.rel (%p20) target = $region8
    $region5: #{tsm_encoder_layer.2} parent=1 // loop_body
      %s24 = ssub.s32 %s19, 1
      %s25 = ssub.s32 %s19, 2
      %s26 = sadd.s32 %s19, 1
      %s27 = ssub.s32 %s19, %s26
      %p28 = scmp.eq.s32.totalorder %s27, 0
      %s30 = sadd.s32 %s29, 1
      %s31 = scalar_select %p28, %s29, %s30
      %p34 = pneg %p28
      %p35 = scmp.eq.s32.totalorder %s19, 1
      %p36 = por %p34, %p35
      %p37 = scmp.ne.s32.totalorder %s29, %s32
      %p38 = scmp.eq.s32.totalorder %s19, 0
      %p39 = por %p37, %p38
      %p40 = scmp.ne.s32.totalorder %s29, %s32
      %p41 = scmp.eq.s32.totalorder %s24, 1
      %p42 = por %p40, %p41
      %p43 = scmp.ne.s32.totalorder %s32, %s33
      %p44 = scmp.eq.s32.totalorder %s24, 0
      %p45 = por %p43, %p44
      %p46 = scmp.ne.s32.totalorder %s32, %s33
      %p47 = scmp.eq.s32.totalorder %s25, 1
      %p48 = por %p46, %p47
      %p50 = scmp.ne.s32.totalorder %s33, %s49
      %p51 = scmp.eq.s32.totalorder %s25, 0
      %p52 = por %p50, %p51
      %s54 = sadd.s32 %s53, 1
      %p57 = scmp.eq.s32.totalorder %s19, 1
      %p58 = scmp.ne.s32.totalorder %s53, %s55
      %p59 = scmp.eq.s32.totalorder %s19, 0
      %p60 = por %p58, %p59
      %p61 = scmp.ne.s32.totalorder %s53, %s55
      %p62 = scmp.eq.s32.totalorder %s24, 1
      %p63 = por %p61, %p62
      %p64 = scmp.ne.s32.totalorder %s55, %s56
      %p65 = scmp.eq.s32.totalorder %s24, 0
      %p66 = por %p64, %p65
      %p67 = scmp.ne.s32.totalorder %s55, %s56
      %p68 = scmp.eq.s32.totalorder %s25, 1
      %p69 = por %p67, %p68
      %p71 = scmp.ne.s32.totalorder %s56, %s70
      %p72 = scmp.eq.s32.totalorder %s25, 0
      %p73 = por %p71, %p72
      %s75 = sadd.s32 %s74, 1
      %p78 = scmp.eq.s32.totalorder %s19, 1
      %p79 = scmp.ne.s32.totalorder %s74, %s76
      %p80 = scmp.eq.s32.totalorder %s19, 0
      %p81 = por %p79, %p80
      %p82 = scmp.ne.s32.totalorder %s74, %s76
      %p83 = scmp.eq.s32.totalorder %s24, 1
      %p84 = por %p82, %p83
      %p85 = scmp.ne.s32.totalorder %s76, %s77
      %p86 = scmp.eq.s32.totalorder %s24, 0
      %p87 = por %p85, %p86
      %p88 = scmp.ne.s32.totalorder %s76, %s77
      %p89 = scmp.eq.s32.totalorder %s25, 1
      %p90 = por %p88, %p89
      %p92 = scmp.ne.s32.totalorder %s77, %s91
      %p93 = scmp.eq.s32.totalorder %s25, 0
      %p94 = por %p92, %p93
      %s96 = sadd.s32 %s95, 1
      %p99 = scmp.eq.s32.totalorder %s19, 1
      %p100 = scmp.ne.s32.totalorder %s95, %s97
      %p101 = scmp.eq.s32.totalorder %s19, 0
      %p102 = por %p100, %p101
      %p103 = scmp.ne.s32.totalorder %s95, %s97
      %p104 = scmp.eq.s32.totalorder %s24, 1
      %p105 = por %p103, %p104
      %p106 = scmp.ne.s32.totalorder %s97, %s98
      %p107 = scmp.eq.s32.totalorder %s24, 0
      %p108 = por %p106, %p107
      %p109 = scmp.ne.s32.totalorder %s97, %s98
      %p110 = scmp.eq.s32.totalorder %s25, 1
      %p111 = por %p109, %p110
      %p113 = scmp.ne.s32.totalorder %s98, %s112
      %p114 = scmp.eq.s32.totalorder %s25, 0
      %p115 = por %p113, %p114
      %s117 = sadd.s32 %s116, 1
      %p120 = scmp.eq.s32.totalorder %s19, 1
      %p121 = scmp.ne.s32.totalorder %s116, %s118
      %p122 = scmp.eq.s32.totalorder %s19, 0
      %p123 = por %p121, %p122
      %p124 = scmp.ne.s32.totalorder %s116, %s118
      %p125 = scmp.eq.s32.totalorder %s24, 1
      %p126 = por %p124, %p125
      %p127 = scmp.ne.s32.totalorder %s118, %s119
      %p128 = scmp.eq.s32.totalorder %s24, 0
      %p129 = por %p127, %p128
      %p130 = scmp.ne.s32.totalorder %s118, %s119
      %p131 = scmp.eq.s32.totalorder %s25, 1
      %p132 = por %p130, %p131
      %p134 = scmp.ne.s32.totalorder %s119, %s133
      %p135 = scmp.eq.s32.totalorder %s25, 0
      %p136 = por %p134, %p135
      %s138 = sadd.s32 %s137, 1
      %p141 = scmp.eq.s32.totalorder %s19, 1
      %p142 = scmp.ne.s32.totalorder %s137, %s139
      %p143 = scmp.eq.s32.totalorder %s19, 0
      %p144 = por %p142, %p143
      %p145 = scmp.ne.s32.totalorder %s137, %s139
      %p146 = scmp.eq.s32.totalorder %s24, 1
      %p147 = por %p145, %p146
      %p148 = scmp.ne.s32.totalorder %s139, %s140
      %p149 = scmp.eq.s32.totalorder %s24, 0
      %p150 = por %p148, %p149
      %p151 = scmp.ne.s32.totalorder %s139, %s140
      %p152 = scmp.eq.s32.totalorder %s25, 1
      %p153 = por %p151, %p152
      %p155 = scmp.ne.s32.totalorder %s140, %s154
      %p156 = scmp.eq.s32.totalorder %s25, 0
      %p157 = por %p155, %p156
      %s159 = sadd.s32 %s158, 1
      %p162 = scmp.eq.s32.totalorder %s19, 1
      %p163 = scmp.ne.s32.totalorder %s158, %s160
      %p164 = scmp.eq.s32.totalorder %s19, 0
      %p165 = por %p163, %p164
      %p166 = scmp.ne.s32.totalorder %s158, %s160
      %p167 = scmp.eq.s32.totalorder %s24, 1
      %p168 = por %p166, %p167
      %p169 = scmp.ne.s32.totalorder %s160, %s161
      %p170 = scmp.eq.s32.totalorder %s24, 0
      %p171 = por %p169, %p170
      %p172 = scmp.ne.s32.totalorder %s160, %s161
      %p173 = scmp.eq.s32.totalorder %s25, 1
      %p174 = por %p172, %p173
      %p176 = scmp.ne.s32.totalorder %s161, %s175
      %p177 = scmp.eq.s32.totalorder %s25, 0
      %p178 = por %p176, %p177
      %s180 = sadd.s32 %s179, 1
      %p183 = scmp.eq.s32.totalorder %s19, 1
      %p184 = scmp.ne.s32.totalorder %s179, %s181
      %p185 = scmp.eq.s32.totalorder %s19, 0
      %p186 = por %p184, %p185
      %p187 = scmp.ne.s32.totalorder %s179, %s181
      %p188 = scmp.eq.s32.totalorder %s24, 1
      %p189 = por %p187, %p188
      %p190 = scmp.ne.s32.totalorder %s181, %s182
      %p191 = scmp.eq.s32.totalorder %s24, 0
      %p192 = por %p190, %p191
      %p193 = scmp.ne.s32.totalorder %s181, %s182
      %p194 = scmp.eq.s32.totalorder %s25, 1
      %p195 = por %p193, %p194
      %p197 = scmp.ne.s32.totalorder %s182, %s196
      %p198 = scmp.eq.s32.totalorder %s25, 0
      %p199 = por %p197, %p198
      %s201 = sadd.s32 %s200, 1
      %p204 = scmp.eq.s32.totalorder %s19, 1
      %p205 = scmp.ne.s32.totalorder %s200, %s202
      %p206 = scmp.eq.s32.totalorder %s19, 0
      %p207 = por %p205, %p206
      %p208 = scmp.ne.s32.totalorder %s200, %s202
      %p209 = scmp.eq.s32.totalorder %s24, 1
      %p210 = por %p208, %p209
      %p211 = scmp.ne.s32.totalorder %s202, %s203
      %p212 = scmp.eq.s32.totalorder %s24, 0
      %p213 = por %p211, %p212
      %p214 = scmp.ne.s32.totalorder %s202, %s203
      %p215 = scmp.eq.s32.totalorder %s25, 1
      %p216 = por %p214, %p215
      %p218 = scmp.ne.s32.totalorder %s203, %s217
      %p219 = scmp.eq.s32.totalorder %s25, 0
      %p220 = por %p218, %p219
      %s221 = ssub.s32 %s19, %s26
      %p222 = scmp.eq.s32.totalorder %s221, 0
      %s224 = sadd.s32 %s223, 1
      %s225 = scalar_select %p222, %s223, %s224
      %p228 = pneg %p222
      %p229 = scmp.eq.s32.totalorder %s19, 1
      %p230 = por %p228, %p229
      %p231 = scmp.ne.s32.totalorder %s223, %s226
      %p232 = scmp.eq.s32.totalorder %s19, 0
      %p233 = por %p231, %p232
      %p234 = scmp.ne.s32.totalorder %s223, %s226
      %p235 = scmp.eq.s32.totalorder %s24, 1
      %p236 = por %p234, %p235
      %p237 = scmp.ne.s32.totalorder %s226, %s227
      %p238 = scmp.eq.s32.totalorder %s24, 0
      %p239 = por %p237, %p238
      %p240 = scmp.ne.s32.totalorder %s226, %s227
      %p241 = scmp.eq.s32.totalorder %s25, 1
      %p242 = por %p240, %p241
      %p244 = scmp.ne.s32.totalorder %s227, %s243
      %p245 = scmp.eq.s32.totalorder %s25, 0
      %p246 = por %p244, %p245
      %s247 = ssub.s32 %s19, %s26
      %p248 = scmp.eq.s32.totalorder %s247, 0
      %s250 = sadd.s32 %s249, 1
      %s251 = scalar_select %p248, %s249, %s250
      %p254 = pneg %p248
      %p255 = scmp.eq.s32.totalorder %s19, 1
      %p256 = por %p254, %p255
      %p257 = scmp.ne.s32.totalorder %s249, %s252
      %p258 = scmp.eq.s32.totalorder %s19, 0
      %p259 = por %p257, %p258
      %p260 = scmp.ne.s32.totalorder %s249, %s252
      %p261 = scmp.eq.s32.totalorder %s24, 1
      %p262 = por %p260, %p261
      %p263 = scmp.ne.s32.totalorder %s252, %s253
      %p264 = scmp.eq.s32.totalorder %s24, 0
      %p265 = por %p263, %p264
      %p266 = scmp.ne.s32.totalorder %s252, %s253
      %p267 = scmp.eq.s32.totalorder %s25, 1
      %p268 = por %p266, %p267
      %p270 = scmp.ne.s32.totalorder %s253, %s269
      %p271 = scmp.eq.s32.totalorder %s25, 0
      %p272 = por %p270, %p271
      %p273 = scmp.le.s32.totalorder 1, %s19
      %p274 = scmp.lt.s32.totalorder %s19, 3
      %p275 = pnand %p273, %p274
      %p276 = pneg %p275
      // Predicated region
      $region9: #{tsm_encoder_layer.2} parent=5 // pred_check
        _
      $region10: #{tsm_encoder_layer.2} parent=5 // pred_check_branch
        %278 = sbr.rel (%p275) target = $region12
      $region11: #{tsm_encoder_layer.2} parent=5 // pred_region
        %s279 = ssub.s32 %s19, 1
        // Predicated region
        $region13: #{tsm_encoder_layer.2} parent=11 // pred_check
          %p280 = pneg %p66
        $region14: #{tsm_encoder_layer.2} parent=11 // pred_check_branch
          %282 = sbr.rel (%p280) target = $region16
        $region15: #{tsm_encoder_layer.2} parent=11 // pred_region
          %284 = vsyncadd [#allocation6], 0
          %s285 = sshll.u32 %s1, 4
          %s286 = int_to_ptr.hbm [resolvable:$true] %s285
          %s287 = sshll.u32 [#allocation5], 4
          %s288 = int_to_ptr.vmem [resolvable:$true] %s287
          %293 = dma.hbm_to_vmem [thread:$0]  %s286, 256, %s288, [#allocation6], 64, 64, 4
        $region16: #{tsm_encoder_layer.2} parent=11 // pred_fallthru
          _
        // Predicated region
        $region17: #{tsm_encoder_layer.2} parent=11 // pred_check
          %p294 = pneg %p87
        $region18: #{tsm_encoder_layer.2} parent=11 // pred_check_branch
          %296 = sbr.rel (%p294) target = $region20
        $region19: #{tsm_encoder_layer.2} parent=11 // pred_region
          _
        $region20: #{tsm_encoder_layer.2} parent=11 // pred_fallthru
          _
        // Predicated region
        $region21: #{tsm_encoder_layer.2} parent=11 // pred_check
          %p297 = pneg %p108
        $region22: #{tsm_encoder_layer.2} parent=11 // pred_check_branch
          %299 = sbr.rel (%p297) target = $region24
        $region23: #{tsm_encoder_layer.2} parent=11 // pred_region
          _
        $region24: #{tsm_encoder_layer.2} parent=11 // pred_fallthru
          _
        // Predicated region
        $region25: #{tsm_encoder_layer.2} parent=11 // pred_check
          %p300 = pneg %p129
        $region26: #{tsm_encoder_layer.2} parent=11 // pred_check_branch
          %302 = sbr.rel (%p300) target = $region28
        $region27: #{tsm_encoder_layer.2} parent=11 // pred_region
          _
        $region28: #{tsm_encoder_layer.2} parent=11 // pred_fallthru
          _
        // Predicated region
        $region29: #{tsm_encoder_layer.2} parent=11 // pred_check
          %p303 = pneg %p150
        $region30: #{tsm_encoder_layer.2} parent=11 // pred_check_branch
          %305 = sbr.rel (%p303) target = $region32
        $region31: #{tsm_encoder_layer.2} parent=11 // pred_region
          _
        $region32: #{tsm_encoder_layer.2} parent=11 // pred_fallthru
          _
        // Predicated region
        $region33: #{tsm_encoder_layer.2} parent=11 // pred_check
          %p306 = pneg %p171
        $region34: #{tsm_encoder_layer.2} parent=11 // pred_check_branch
          %308 = sbr.rel (%p306) target = $region36
        $region35: #{tsm_encoder_layer.2} parent=11 // pred_region
          %310 = vsyncadd [#allocation8], 0
          %s311 = sshll.u32 %s6, 4
          %s312 = int_to_ptr.hbm [resolvable:$true] %s311
          %s313 = sshll.u32 [#allocation7], 4
          %s314 = int_to_ptr.vmem [resolvable:$true] %s313
          %319 = dma.hbm_to_vmem [thread:$0]  %s312, 256, %s314, [#allocation8], 128, 128, 8
        $region36: #{tsm_encoder_layer.2} parent=11 // pred_fallthru
          _
        // Predicated region
        $region37: #{tsm_encoder_layer.2} parent=11 // pred_check
          %p320 = pneg %p192
        $region38: #{tsm_encoder_layer.2} parent=11 // pred_check_branch
          %322 = sbr.rel (%p320) target = $region40
        $region39: #{tsm_encoder_layer.2} parent=11 // pred_region
          _
        $region40: #{tsm_encoder_layer.2} parent=11 // pred_fallthru
          _
        // Predicated region
        $region41: #{tsm_encoder_layer.2} parent=11 // pred_check
          %p323 = pneg %p213
        $region42: #{tsm_encoder_layer.2} parent=11 // pred_check_branch
          %325 = sbr.rel (%p323) target = $region44
        $region43: #{tsm_encoder_layer.2} parent=11 // pred_region
          _
        $region44: #{tsm_encoder_layer.2} parent=11 // pred_fallthru
          _
      $region12: #{tsm_encoder_layer.2} parent=5 // pred_fallthru
        _
      %p326 = scmp.lt.s32.totalorder %s19, 2
      // Predicated region
      $region45: #{tsm_encoder_layer.2} parent=5 // pred_check
        %p327 = pneg %p326
      $region46: #{tsm_encoder_layer.2} parent=5 // pred_check_branch
        %329 = sbr.rel (%p327) target = $region48
      $region47: #{tsm_encoder_layer.2} parent=5 // pred_region
        // Predicated region
        $region49: #{tsm_encoder_layer.2} parent=47 // pred_check
          %p330 = pneg %p39
        $region50: #{tsm_encoder_layer.2} parent=47 // pred_check_branch
          %332 = sbr.rel (%p330) target = $region52
        $region51: #{tsm_encoder_layer.2} parent=47 // pred_region
          %p333 = scmp.lt.s32.totalorder %s19, 1
          %s334 = scalar_select %p333, %s19, 1
          %s335 = smul.addr %s334, 8
          %s336 = scalar_lea.vmem %s0, %s335
        $region52: #{tsm_encoder_layer.2} parent=47 // pred_fallthru
          _
      $region48: #{tsm_encoder_layer.2} parent=5 // pred_fallthru
        _
      %p337 = scmp.le.s32.totalorder 1, %s19
      %p338 = scmp.lt.s32.totalorder %s19, 3
      %p339 = pnand %p337, %p338
      %p340 = pneg %p339
      // Predicated region
      $region53: #{tsm_encoder_layer.2} parent=5 // pred_check
        _
      $region54: #{tsm_encoder_layer.2} parent=5 // pred_check_branch
        %342 = sbr.rel (%p339) target = $region56
      $region55: #{tsm_encoder_layer.2} parent=5 // pred_region
        %s343 = ssub.s32 %s19, 1
        // Predicated region
        $region57: #{tsm_encoder_layer.2} parent=55 // pred_check
          %p344 = pneg %p66
        $region58: #{tsm_encoder_layer.2} parent=55 // pred_check_branch
          %346 = sbr.rel (%p344) target = $region60
        $region59: #{tsm_encoder_layer.2} parent=55 // pred_region
          %348 = dma.done [#allocation6], 256
        $region60: #{tsm_encoder_layer.2} parent=55 // pred_fallthru
          _
        // Predicated region
        $region61: #{tsm_encoder_layer.2} parent=55 // pred_check
          %p349 = pneg %p171
        $region62: #{tsm_encoder_layer.2} parent=55 // pred_check_branch
          %351 = sbr.rel (%p349) target = $region64
        $region63: #{tsm_encoder_layer.2} parent=55 // pred_region
          %353 = dma.done [#allocation8], 256
        $region64: #{tsm_encoder_layer.2} parent=55 // pred_fallthru
          _
        %p354 = scmp.lt.s32.totalorder %s24, 1
        %s355 = scalar_select %p354, %s24, 1
        %s356 = smul.addr %s355, 8
        %s357 = scalar_lea.vmem %s0, %s356
        %p358 = pneg %p45
        %p359 = pneg %p42
        %p360 = pneg %p66
        %p361 = pneg %p63
        %p362 = pneg %p87
        %p363 = pneg %p84
        %p364 = pneg %p108
        %p365 = pneg %p105
        %p366 = pneg %p129
        %p367 = pneg %p126
        %p368 = pneg %p150
        %p369 = pneg %p147
        %p370 = pneg %p171
        %p371 = pneg %p168
        %p372 = pneg %p192
        %p373 = pneg %p189
        %p374 = pneg %p213
        %p375 = pneg %p210
        %p376 = pneg %p239
        %p377 = pneg %p236
        %p378 = scmp.lt.s32.totalorder %s24, 1
        %s379 = scalar_select %p378, %s24, 1
        %s380 = smul.addr %s379, 8
        %s381 = scalar_lea.vmem %s9, %s380
        %p382 = pneg %p265
        %p383 = pneg %p262
        %p384 = scmp.lt.s32.totalorder %s24, 1
        %s385 = scalar_select %p384, %s24, 1
        %s386 = smul.addr %s385, 2
        %s387 = scalar_lea.vmem %s10, %s386
        %p388 = scmp.lt.s32.totalorder %s24, 1
        %s389 = scalar_select %p388, %s24, 1
        %s390 = smul.addr %s389, 8
        %s391 = scalar_lea.vmem %s0, %s390
        %p392 = scmp.lt.s32.totalorder %s24, 1
        %s393 = scalar_select %p392, %s24, 1
        %s394 = smul.addr %s393, 8
        %s395 = scalar_lea.vmem %s9, %s394
        %p396 = scmp.lt.s32.totalorder %s24, 1
        %s397 = scalar_select %p396, %s24, 1
        %s398 = smul.addr %s397, 2
        %s399 = scalar_lea.vmem %s10, %s398
        %v401 = vld [vmem:[%s391] sm:$0xff]
        %v402 = vpack.c.bf16 %v401, %v401
        %v403 = vld [vmem:[#allocation5] sm:$0xf]
        %v404 = vld [vmem:[#allocation5 + $0x4] sm:$0xf]
        %v405 = vld [vmem:[#allocation5 + $0x8] sm:$0xf]
        %v406 = vld [vmem:[#allocation5 + $0xc] sm:$0xf]
        %v411 = vunpack.c.l.b16 %v403
        %v412 = vunpack.c.l.b16 %v404
        %v413 = vunpack.c.l.b16 %v405
        %v414 = vunpack.c.l.b16 %v406
        %v415 = vpack.c.b16 %v412, %v411
        %v416 = vpack.c.b16 %v414, %v413
        %vm419 = vcmask 261120
        %v421 = vsel %vm419, %v402, 0
        %423 = vmatpush.bf16.msra.mxu0 0
        %424 = vmatpush.bf16.msra.mxu0 0
        %425 = vmatpush.bf16.msra.mxu0 0
        %426 = vmatpush.bf16.msra.mxu0 0
        %427 = vmatpush.bf16.msra.mxu0 0
        %428 = vmatpush.bf16.msra.mxu0 0
        %429 = vmatpush.bf16.msra.mxu0 %v416
        %430 = vmatpush.bf16.msra.mxu0 %v415
        %431 = vmatmul.bf16.gmra.mxu0 %v421
        %v432 = vpop.f32.mrf.mxu0
        %v433 = vadd.f32 0.0, %v432
        %v434 = vpop.f32.mrf.mxu0
        %435 = vdwg.mxu0
        %v437 = vrot.slane %v433, 5
        %vm439 = vcmask 1042432
        %v440 = vsel %vm439, 0.0, %v437
        %v441 = vld [vmem:[%s2] sm:$0x1]
        %v442 = vperm.slane %v441, 0
        %v443 = vmul.f32 %v440, %v442
        %v444 = vadd.f32 %v443, 0.0
        %v445 = vld [vmem:[%s2 + $0x1] sm:$0x1]
        %v446 = vperm.slane %v445, 0
        %v447 = vmul.f32 %v440, %v446
        %v448 = vmul.f32 %v437, %v446
        %vm451 = vcmask 1046528
        %v452 = vrot.slane %v447, 1
        %v453 = vrot.slane %v448, 1
        %v454 = vsel %vm451, %v452, %v453
        %v456 = vadd.f32 %v444, %v454
        %v457 = vld [vmem:[%s2 + $0x2] sm:$0x1]
        %v458 = vperm.slane %v457, 0
        %v459 = vmul.f32 %v440, %v458
        %v460 = vmul.f32 %v437, %v458
        %vm463 = vcmask 1045504
        %v464 = vrot.slane %v459, 2
        %v465 = vrot.slane %v460, 2
        %v466 = vsel %vm463, %v464, %v465
        %v468 = vadd.f32 %v456, %v466
        %v469 = vld [vmem:[%s2 + $0x3] sm:$0x1]
        %v470 = vperm.slane %v469, 0
        %v471 = vmul.f32 %v440, %v470
        %v472 = vmul.f32 %v437, %v470
        %vm475 = vcmask 1044480
        %v476 = vrot.slane %v471, 3
        %v477 = vrot.slane %v472, 3
        %v478 = vsel %vm475, %v476, %v477
        %v480 = vadd.f32 %v468, %v478
        %v481 = vld [vmem:[%s3] sm:$0x1]
        %v483 = vperm.slane %v481, 0
        %v485 = vadd.f32 %v480, %v483
        %v486 = vxor.u32 %v485, 2147483648
        %v487 = vmul.f32 %v486, 1.442695
        %v488 = vpow.pop %v487
        %v489 = vadd.f32 %v488, 1.0
        %v490 = vrcp.pop %v489
        %v491 = vmul.f32 %v489, %v490
        %v492 = vsub.f32 1.0, %v491
        %v493 = vmul.f32 %v490, %v492
        %v494 = vadd.f32 %v490, %v493
        %vm495 = vweird.f32 %v489
        %vm496 = vweird.f32 %v490
        %vm497 = vmor %vm495, %vm496
        %v498 = vsel %vm497, %v490, %v494
        %v499 = vand.u32 2147483647, %v489
        %vm500 = vcmp.eq.f32.partialorder %v499, 8.507059e+37
        %v501 = vand.u32 %v489, 2147483648
        %v502 = vor.u32 1.1754944e-38, %v501
        %v503 = vsel %vm500, %v502, %v498
        %v504 = vmul.f32 1.0, %v503
        %v505 = vmul.f32 %v485, %v504
        %v506 = vpack.c.bf16 %v505, %v505
        %v507 = vld [vmem:[%s4] sm:$0xf]
        %v508 = vld [vmem:[%s4 + $0x4] sm:$0xf]
        %v509 = vld [vmem:[%s4 + $0x8] sm:$0xf]
        %v510 = vld [vmem:[%s4 + $0xc] sm:$0xf]
        %v511 = vld [vmem:[%s4 + $0x10] sm:$0xf]
        %v512 = vld [vmem:[%s4 + $0x14] sm:$0xf]
        %v513 = vld [vmem:[%s4 + $0x18] sm:$0xf]
        %v514 = vld [vmem:[%s4 + $0x1c] sm:$0xf]
        %v523 = vunpack.c.l.b16 %v507
        %v524 = vunpack.c.l.b16 %v508
        %v525 = vunpack.c.l.b16 %v509
        %v526 = vunpack.c.l.b16 %v510
        %v527 = vunpack.c.l.b16 %v511
        %v528 = vunpack.c.l.b16 %v512
        %v529 = vunpack.c.l.b16 %v513
        %v530 = vunpack.c.l.b16 %v514
        %v531 = vpack.c.b16 %v524, %v523
        %v532 = vpack.c.b16 %v526, %v525
        %v533 = vpack.c.b16 %v528, %v527
        %v534 = vpack.c.b16 %v530, %v529
        %vm539 = vcmask 523264
        %v541 = vsel %vm539, %v506, 0
        %543 = vmatpush.bf16.msra.mxu0 0
        %544 = vmatpush.bf16.msra.mxu0 0
        %545 = vmatpush.bf16.msra.mxu0 0
        %546 = vmatpush.bf16.msra.mxu0 0
        %547 = vmatpush.bf16.msra.mxu0 %v534
        %548 = vmatpush.bf16.msra.mxu0 %v533
        %549 = vmatpush.bf16.msra.mxu0 %v532
        %550 = vmatpush.bf16.msra.mxu0 %v531
        %551 = vmatmul.bf16.gmra.mxu0 %v541
        %v552 = vpop.f32.mrf.mxu0
        %v553 = vadd.f32 0.0, %v552
        %v554 = vpop.f32.mrf.mxu0
        %555 = vdwg.mxu0
        %v556 = vld [vmem:[%s5] sm:$0x1]
        %v558 = vperm.slane %v556, 0
        %v560 = vadd.f32 %v553, %v558
        %v561 = vmax.f32 %v560, 0.0
        %vm562 = vcmp.ne.f32.partialorder %v560, %v560
        %v563 = vadd.f32 %v560, 0.0
        %v564 = vand.u32 2147483647, %v560
        %v565 = vsub.f32 0.0, %v564
        %v566 = vmul.f32 %v565, 1.442695
        %v567 = vpow.pop %v566
        %v568 = vadd.f32 %v567, 1.0
        %v569 = vlog2.pop %v568
        %v570 = vmul.f32 %v569, 0.6931472
        %v571 = vmul.f32 -0.5, %v567
        %v572 = vadd.f32 %v571, 1.0
        %v573 = vmul.f32 %v572, %v567
        %v574 = vand.u32 2147483647, %v567
        %vm575 = vcmp.lt.f32.partialorder %v574, 0.0004427343
        %v576 = vsel %vm575, %v573, %v570
        %v577 = vadd.f32 %v561, %v576
        %v578 = vsel %vm562, %v563, %v577
        %v579 = vld [vmem:[#allocation7] sm:$0xff]
        %v580 = vld [vmem:[#allocation7 + $0x8] sm:$0xff]
        %v581 = vmul.f32 %v579, 1.442695
        %v582 = vpow.pop %v581
        %v583 = vmul.f32 %v580, 1.442695
        %v584 = vpow.pop %v583
        %v585 = vsub.f32 0.0, %v582
        %v586 = vsub.f32 0.0, %v584
        %v588 = vrot.slane %v578, 1
        %v589 = vrot.slane %v578, 2
        %v590 = vrot.slane %v578, 3
        %v591 = vrot.slane %v578, 4
        %v592 = vrot.slane %v578, 5
        %v593 = vrot.slane %v578, 6
        %v594 = vrot.slane %v578, 7
        %v595 = vperm.slane %v578, 0
        %v596 = vperm.slane %v588, 0
        %v597 = vperm.slane %v589, 0
        %v598 = vperm.slane %v590, 0
        %v599 = vperm.slane %v591, 0
        %v600 = vperm.slane %v592, 0
        %v601 = vperm.slane %v593, 0
        %v602 = vperm.slane %v594, 0
        %v611 = vmul.f32 %v595, %v585
        %v612 = vmul.f32 %v595, %v586
        %v613 = vmul.f32 %v596, %v585
        %v614 = vmul.f32 %v596, %v586
        %v615 = vmul.f32 %v597, %v585
        %v616 = vmul.f32 %v597, %v586
        %v617 = vmul.f32 %v598, %v585
        %v618 = vmul.f32 %v598, %v586
        %v619 = vmul.f32 %v599, %v585
        %v620 = vmul.f32 %v599, %v586
        %v621 = vmul.f32 %v600, %v585
        %v622 = vmul.f32 %v600, %v586
        %v623 = vmul.f32 %v601, %v585
        %v624 = vmul.f32 %v601, %v586
        %v625 = vmul.f32 %v602, %v585
        %v626 = vmul.f32 %v602, %v586
        %v627 = vmul.f32 %v611, 1.442695
        %v628 = vpow.pop %v627
        %v629 = vmul.f32 %v612, 1.442695
        %v630 = vpow.pop %v629
        %v631 = vmul.f32 %v613, 1.442695
        %v632 = vpow.pop %v631
        %v633 = vmul.f32 %v614, 1.442695
        %v634 = vpow.pop %v633
        %v635 = vmul.f32 %v615, 1.442695
        %v636 = vpow.pop %v635
        %v637 = vmul.f32 %v616, 1.442695
        %v638 = vpow.pop %v637
        %v639 = vmul.f32 %v617, 1.442695
        %v640 = vpow.pop %v639
        %v641 = vmul.f32 %v618, 1.442695
        %v642 = vpow.pop %v641
        %v643 = vmul.f32 %v619, 1.442695
        %v644 = vpow.pop %v643
        %v645 = vmul.f32 %v620, 1.442695
        %v646 = vpow.pop %v645
        %v647 = vmul.f32 %v621, 1.442695
        %v648 = vpow.pop %v647
        %v649 = vmul.f32 %v622, 1.442695
        %v650 = vpow.pop %v649
        %v651 = vmul.f32 %v623, 1.442695
        %v652 = vpow.pop %v651
        %v653 = vmul.f32 %v624, 1.442695
        %v654 = vpow.pop %v653
        %v655 = vmul.f32 %v625, 1.442695
        %v656 = vpow.pop %v655
        %v657 = vmul.f32 %v626, 1.442695
        %v658 = vpow.pop %v657
        %659 = vst.msk [vmem:[#allocation2] sm:$0xff] %vm539, %v628
        %660 = vst.msk [vmem:[#allocation2 + $0x8] sm:$0xff] %vm539, %v630
        %661 = vst.msk [vmem:[#allocation2 + $0x10] sm:$0xff] %vm539, %v632
        %662 = vst.msk [vmem:[#allocation2 + $0x18] sm:$0xff] %vm539, %v634
        %663 = vst.msk [vmem:[#allocation2 + $0x20] sm:$0xff] %vm539, %v636
        %664 = vst.msk [vmem:[#allocation2 + $0x28] sm:$0xff] %vm539, %v638
        %665 = vst.msk [vmem:[#allocation2 + $0x30] sm:$0xff] %vm539, %v640
        %666 = vst.msk [vmem:[#allocation2 + $0x38] sm:$0xff] %vm539, %v642
        %667 = vst.msk [vmem:[#allocation2 + $0x40] sm:$0xff] %vm539, %v644
        %668 = vst.msk [vmem:[#allocation2 + $0x48] sm:$0xff] %vm539, %v646
        %669 = vst.msk [vmem:[#allocation2 + $0x50] sm:$0xff] %vm539, %v648
        %670 = vst.msk [vmem:[#allocation2 + $0x58] sm:$0xff] %vm539, %v650
        %671 = vst.msk [vmem:[#allocation2 + $0x60] sm:$0xff] %vm539, %v652
        %672 = vst.msk [vmem:[#allocation2 + $0x68] sm:$0xff] %vm539, %v654
        %673 = vst.msk [vmem:[#allocation2 + $0x70] sm:$0xff] %vm539, %v656
        %674 = vst.msk [vmem:[#allocation2 + $0x78] sm:$0xff] %vm539, %v658
        %v675 = vmul.f32 %v578, %v505
        %v677 = vrot.slane %v675, 1
        %v678 = vrot.slane %v675, 2
        %v679 = vrot.slane %v675, 3
        %v680 = vrot.slane %v675, 4
        %v681 = vrot.slane %v675, 5
        %v682 = vrot.slane %v675, 6
        %v683 = vrot.slane %v675, 7
        %v684 = vperm.slane %v553, 0
        %v685 = vlaneseq
        %v686 = vshrl.u32 %v685, 7
        %v687 = vadd.s32 %v686, 64
        %688 = vset.pattern.permute.xlu0 %v687
        %689 = vperm.xlu0 %688, %v684
        %v690 = vpop.permute.xlu0 %689
        %v691 = vlaneseq
        %v692 = vshrl.u32 %v691, 7
        %v693 = vadd.s32 %v692, 72
        %694 = vset.pattern.permute.xlu0 %v693
        %695 = vperm.xlu0 %694, %v684
        %v696 = vpop.permute.xlu0 %695
        %v697 = vperm.slane %v553, 1
        %v698 = vlaneseq
        %v699 = vshrl.u32 %v698, 7
        %v700 = vadd.s32 %v699, 64
        %701 = vset.pattern.permute.xlu0 %v700
        %702 = vperm.xlu0 %701, %v697
        %v703 = vpop.permute.xlu0 %702
        %v704 = vlaneseq
        %v705 = vshrl.u32 %v704, 7
        %v706 = vadd.s32 %v705, 72
        %707 = vset.pattern.permute.xlu0 %v706
        %708 = vperm.xlu0 %707, %v697
        %v709 = vpop.permute.xlu0 %708
        %v710 = vperm.slane %v553, 2
        %v711 = vlaneseq
        %v712 = vshrl.u32 %v711, 7
        %v713 = vadd.s32 %v712, 64
        %714 = vset.pattern.permute.xlu0 %v713
        %715 = vperm.xlu0 %714, %v710
        %v716 = vpop.permute.xlu0 %715
        %v717 = vlaneseq
        %v718 = vshrl.u32 %v717, 7
        %v719 = vadd.s32 %v718, 72
        %720 = vset.pattern.permute.xlu0 %v719
        %721 = vperm.xlu0 %720, %v710
        %v722 = vpop.permute.xlu0 %721
        %v723 = vperm.slane %v553, 3
        %v724 = vlaneseq
        %v725 = vshrl.u32 %v724, 7
        %v726 = vadd.s32 %v725, 64
        %727 = vset.pattern.permute.xlu0 %v726
        %728 = vperm.xlu0 %727, %v723
        %v729 = vpop.permute.xlu0 %728
        %v730 = vlaneseq
        %v731 = vshrl.u32 %v730, 7
        %v732 = vadd.s32 %v731, 72
        %733 = vset.pattern.permute.xlu0 %v732
        %734 = vperm.xlu0 %733, %v723
        %v735 = vpop.permute.xlu0 %734
        %v736 = vperm.slane %v553, 4
        %v737 = vlaneseq
        %v738 = vshrl.u32 %v737, 7
        %v739 = vadd.s32 %v738, 64
        %740 = vset.pattern.permute.xlu0 %v739
        %741 = vperm.xlu0 %740, %v736
        %v742 = vpop.permute.xlu0 %741
        %v743 = vlaneseq
        %v744 = vshrl.u32 %v743, 7
        %v745 = vadd.s32 %v744, 72
        %746 = vset.pattern.permute.xlu0 %v745
        %747 = vperm.xlu0 %746, %v736
        %v748 = vpop.permute.xlu0 %747
        %v749 = vperm.slane %v553, 5
        %v750 = vlaneseq
        %v751 = vshrl.u32 %v750, 7
        %v752 = vadd.s32 %v751, 64
        %753 = vset.pattern.permute.xlu0 %v752
        %754 = vperm.xlu0 %753, %v749
        %v755 = vpop.permute.xlu0 %754
        %v756 = vlaneseq
        %v757 = vshrl.u32 %v756, 7
        %v758 = vadd.s32 %v757, 72
        %759 = vset.pattern.permute.xlu0 %v758
        %760 = vperm.xlu0 %759, %v749
        %v761 = vpop.permute.xlu0 %760
        %v762 = vperm.slane %v553, 6
        %v763 = vlaneseq
        %v764 = vshrl.u32 %v763, 7
        %v765 = vadd.s32 %v764, 64
        %766 = vset.pattern.permute.xlu0 %v765
        %767 = vperm.xlu0 %766, %v762
        %v768 = vpop.permute.xlu0 %767
        %v769 = vlaneseq
        %v770 = vshrl.u32 %v769, 7
        %v771 = vadd.s32 %v770, 72
        %772 = vset.pattern.permute.xlu0 %v771
        %773 = vperm.xlu0 %772, %v762
        %v774 = vpop.permute.xlu0 %773
        %v775 = vperm.slane %v553, 7
        %v776 = vlaneseq
        %v777 = vshrl.u32 %v776, 7
        %v778 = vadd.s32 %v777, 64
        %779 = vset.pattern.permute.xlu0 %v778
        %780 = vperm.xlu0 %779, %v775
        %v781 = vpop.permute.xlu0 %780
        %v782 = vlaneseq
        %v783 = vshrl.u32 %v782, 7
        %v784 = vadd.s32 %v783, 72
        %785 = vset.pattern.permute.xlu0 %v784
        %786 = vperm.xlu0 %785, %v775
        %v787 = vpop.permute.xlu0 %786
        %v788 = vperm.slane %v675, 0
        %v789 = vperm.slane %v677, 0
        %v790 = vperm.slane %v678, 0
        %v791 = vperm.slane %v679, 0
        %v792 = vperm.slane %v680, 0
        %v793 = vperm.slane %v681, 0
        %v794 = vperm.slane %v682, 0
        %v795 = vperm.slane %v683, 0
        %v804 = vmul.f32 %v788, %v690
        %v805 = vmul.f32 %v788, %v696
        %v806 = vmul.f32 %v789, %v703
        %v807 = vmul.f32 %v789, %v709
        %v808 = vmul.f32 %v790, %v716
        %v809 = vmul.f32 %v790, %v722
        %v810 = vmul.f32 %v791, %v729
        %v811 = vmul.f32 %v791, %v735
        %v812 = vmul.f32 %v792, %v742
        %v813 = vmul.f32 %v792, %v748
        %v814 = vmul.f32 %v793, %v755
        %v815 = vmul.f32 %v793, %v761
        %v816 = vmul.f32 %v794, %v768
        %v817 = vmul.f32 %v794, %v774
        %v818 = vmul.f32 %v795, %v781
        %v819 = vmul.f32 %v795, %v787
        %820 = vst.msk [vmem:[#allocation3] sm:$0xff] %vm539, %v804
        %821 = vst.msk [vmem:[#allocation3 + $0x8] sm:$0xff] %vm539, %v805
        %822 = vst.msk [vmem:[#allocation3 + $0x10] sm:$0xff] %vm539, %v806
        %823 = vst.msk [vmem:[#allocation3 + $0x18] sm:$0xff] %vm539, %v807
        %824 = vst.msk [vmem:[#allocation3 + $0x20] sm:$0xff] %vm539, %v808
        %825 = vst.msk [vmem:[#allocation3 + $0x28] sm:$0xff] %vm539, %v809
        %826 = vst.msk [vmem:[#allocation3 + $0x30] sm:$0xff] %vm539, %v810
        %827 = vst.msk [vmem:[#allocation3 + $0x38] sm:$0xff] %vm539, %v811
        %828 = vst.msk [vmem:[#allocation3 + $0x40] sm:$0xff] %vm539, %v812
        %829 = vst.msk [vmem:[#allocation3 + $0x48] sm:$0xff] %vm539, %v813
        %830 = vst.msk [vmem:[#allocation3 + $0x50] sm:$0xff] %vm539, %v814
        %831 = vst.msk [vmem:[#allocation3 + $0x58] sm:$0xff] %vm539, %v815
        %832 = vst.msk [vmem:[#allocation3 + $0x60] sm:$0xff] %vm539, %v816
        %833 = vst.msk [vmem:[#allocation3 + $0x68] sm:$0xff] %vm539, %v817
        %834 = vst.msk [vmem:[#allocation3 + $0x70] sm:$0xff] %vm539, %v818
        %835 = vst.msk [vmem:[#allocation3 + $0x78] sm:$0xff] %vm539, %v819
        %v836 = vld [vmem:[#allocation2] sm:$0xff]
        %v837 = vld [vmem:[#allocation2 + $0x8] sm:$0xff]
        %v838 = vmul.f32 %v836, 0.0
        %v839 = vmul.f32 %v837, 0.0
        %v840 = vld [vmem:[#allocation3] sm:$0xff]
        %v841 = vld [vmem:[#allocation3 + $0x8] sm:$0xff]
        %v842 = vadd.f32 %v838, %v840
        %v843 = vadd.f32 %v839, %v841
        %844 = vst.msk [vmem:[#allocation4] sm:$0xff] %vm539, %v842
        %845 = vst.msk [vmem:[#allocation4 + $0x8] sm:$0xff] %vm539, %v843
        %s846 = scalar_lea.vmem [#allocation2], 16
        %v847 = vld [vmem:[%s846] sm:$0xff]
        %v848 = vld [vmem:[%s846 + $0x8] sm:$0xff]
        %v849 = vmul.f32 %v847, %v842
        %v850 = vmul.f32 %v848, %v843
        %s851 = scalar_lea.vmem [#allocation3], 16
        %v852 = vld [vmem:[%s851] sm:$0xff]
        %v853 = vld [vmem:[%s851 + $0x8] sm:$0xff]
        %v854 = vadd.f32 %v849, %v852
        %v855 = vadd.f32 %v850, %v853
        %s856 = scalar_lea.vmem [#allocation4], 16
        %857 = vst.msk [vmem:[%s856] sm:$0xff] %vm539, %v854
        %858 = vst.msk [vmem:[%s856 + $0x8] sm:$0xff] %vm539, %v855
        %s859 = scalar_lea.vmem [#allocation2], 32
        %v860 = vld [vmem:[%s859] sm:$0xff]
        %v861 = vld [vmem:[%s859 + $0x8] sm:$0xff]
        %v862 = vmul.f32 %v860, %v854
        %v863 = vmul.f32 %v861, %v855
        %s864 = scalar_lea.vmem [#allocation3], 32
        %v865 = vld [vmem:[%s864] sm:$0xff]
        %v866 = vld [vmem:[%s864 + $0x8] sm:$0xff]
        %v867 = vadd.f32 %v862, %v865
        %v868 = vadd.f32 %v863, %v866
        %s869 = scalar_lea.vmem [#allocation4], 32
        %870 = vst.msk [vmem:[%s869] sm:$0xff] %vm539, %v867
        %871 = vst.msk [vmem:[%s869 + $0x8] sm:$0xff] %vm539, %v868
        %s872 = scalar_lea.vmem [#allocation2], 48
        %v873 = vld [vmem:[%s872] sm:$0xff]
        %v874 = vld [vmem:[%s872 + $0x8] sm:$0xff]
        %v875 = vmul.f32 %v873, %v867
        %v876 = vmul.f32 %v874, %v868
        %s877 = scalar_lea.vmem [#allocation3], 48
        %v878 = vld [vmem:[%s877] sm:$0xff]
        %v879 = vld [vmem:[%s877 + $0x8] sm:$0xff]
        %v880 = vadd.f32 %v875, %v878
        %v881 = vadd.f32 %v876, %v879
        %s882 = scalar_lea.vmem [#allocation4], 48
        %883 = vst.msk [vmem:[%s882] sm:$0xff] %vm539, %v880
        %884 = vst.msk [vmem:[%s882 + $0x8] sm:$0xff] %vm539, %v881
        %s885 = scalar_lea.vmem [#allocation2], 64
        %v886 = vld [vmem:[%s885] sm:$0xff]
        %v887 = vld [vmem:[%s885 + $0x8] sm:$0xff]
        %v888 = vmul.f32 %v886, %v880
        %v889 = vmul.f32 %v887, %v881
        %s890 = scalar_lea.vmem [#allocation3], 64
        %v891 = vld [vmem:[%s890] sm:$0xff]
        %v892 = vld [vmem:[%s890 + $0x8] sm:$0xff]
        %v893 = vadd.f32 %v888, %v891
        %v894 = vadd.f32 %v889, %v892
        %s895 = scalar_lea.vmem [#allocation4], 64
        %896 = vst.msk [vmem:[%s895] sm:$0xff] %vm539, %v893
        %897 = vst.msk [vmem:[%s895 + $0x8] sm:$0xff] %vm539, %v894
        %s898 = scalar_lea.vmem [#allocation2], 80
        %v899 = vld [vmem:[%s898] sm:$0xff]
        %v900 = vld [vmem:[%s898 + $0x8] sm:$0xff]
        %v901 = vmul.f32 %v899, %v893
        %v902 = vmul.f32 %v900, %v894
        %s903 = scalar_lea.vmem [#allocation3], 80
        %v904 = vld [vmem:[%s903] sm:$0xff]
        %v905 = vld [vmem:[%s903 + $0x8] sm:$0xff]
        %v906 = vadd.f32 %v901, %v904
        %v907 = vadd.f32 %v902, %v905
        %s908 = scalar_lea.vmem [#allocation4], 80
        %909 = vst.msk [vmem:[%s908] sm:$0xff] %vm539, %v906
        %910 = vst.msk [vmem:[%s908 + $0x8] sm:$0xff] %vm539, %v907
        %s911 = scalar_lea.vmem [#allocation2], 96
        %v912 = vld [vmem:[%s911] sm:$0xff]
        %v913 = vld [vmem:[%s911 + $0x8] sm:$0xff]
        %v914 = vmul.f32 %v912, %v906
        %v915 = vmul.f32 %v913, %v907
        %s916 = scalar_lea.vmem [#allocation3], 96
        %v917 = vld [vmem:[%s916] sm:$0xff]
        %v918 = vld [vmem:[%s916 + $0x8] sm:$0xff]
        %v919 = vadd.f32 %v914, %v917
        %v920 = vadd.f32 %v915, %v918
        %s921 = scalar_lea.vmem [#allocation4], 96
        %922 = vst.msk [vmem:[%s921] sm:$0xff] %vm539, %v919
        %923 = vst.msk [vmem:[%s921 + $0x8] sm:$0xff] %vm539, %v920
        %s924 = scalar_lea.vmem [#allocation2], 112
        %v925 = vld [vmem:[%s924] sm:$0xff]
        %v926 = vld [vmem:[%s924 + $0x8] sm:$0xff]
        %v927 = vmul.f32 %v925, %v919
        %v928 = vmul.f32 %v926, %v920
        %s929 = scalar_lea.vmem [#allocation3], 112
        %v930 = vld [vmem:[%s929] sm:$0xff]
        %v931 = vld [vmem:[%s929 + $0x8] sm:$0xff]
        %v932 = vadd.f32 %v927, %v930
        %v933 = vadd.f32 %v928, %v931
        %s934 = scalar_lea.vmem [#allocation4], 112
        %935 = vst.msk [vmem:[%s934] sm:$0xff] %vm539, %v932
        %936 = vst.msk [vmem:[%s934 + $0x8] sm:$0xff] %vm539, %v933
        %v937 = vld [vmem:[#allocation4] sm:$0xff]
        %v938 = vld [vmem:[#allocation4 + $0x8] sm:$0xff]
        %v939 = vld [vmem:[#allocation4 + $0x10] sm:$0xff]
        %v940 = vld [vmem:[#allocation4 + $0x18] sm:$0xff]
        %v941 = vld [vmem:[#allocation4 + $0x20] sm:$0xff]
        %v942 = vld [vmem:[#allocation4 + $0x28] sm:$0xff]
        %v943 = vld [vmem:[#allocation4 + $0x30] sm:$0xff]
        %v944 = vld [vmem:[#allocation4 + $0x38] sm:$0xff]
        %v945 = vld [vmem:[#allocation4 + $0x40] sm:$0xff]
        %v946 = vld [vmem:[#allocation4 + $0x48] sm:$0xff]
        %v947 = vld [vmem:[#allocation4 + $0x50] sm:$0xff]
        %v948 = vld [vmem:[#allocation4 + $0x58] sm:$0xff]
        %v949 = vld [vmem:[#allocation4 + $0x60] sm:$0xff]
        %v950 = vld [vmem:[#allocation4 + $0x68] sm:$0xff]
        %v951 = vld [vmem:[#allocation4 + $0x70] sm:$0xff]
        %v952 = vld [vmem:[#allocation4 + $0x78] sm:$0xff]
        %v953 = vlaneseq
        %v954 = vshrl.u32 %v953, 7
        %v955 = vadd.s32 %v954, 80
        %956 = vset.pattern.permute.xlu0 %v955
        %957 = vperm.xlu0 %956, %v684
        %v958 = vpop.permute.xlu0 %957
        %v959 = vlaneseq
        %v960 = vshrl.u32 %v959, 7
        %v961 = vadd.s32 %v960, 88
        %962 = vset.pattern.permute.xlu0 %v961
        %963 = vperm.xlu0 %962, %v684
        %v964 = vpop.permute.xlu0 %963
        %v965 = vlaneseq
        %v966 = vshrl.u32 %v965, 7
        %v967 = vadd.s32 %v966, 80
        %968 = vset.pattern.permute.xlu0 %v967
        %969 = vperm.xlu0 %968, %v697
        %v970 = vpop.permute.xlu0 %969
        %v971 = vlaneseq
        %v972 = vshrl.u32 %v971, 7
        %v973 = vadd.s32 %v972, 88
        %974 = vset.pattern.permute.xlu0 %v973
        %975 = vperm.xlu0 %974, %v697
        %v976 = vpop.permute.xlu0 %975
        %v977 = vlaneseq
        %v978 = vshrl.u32 %v977, 7
        %v979 = vadd.s32 %v978, 80
        %980 = vset.pattern.permute.xlu0 %v979
        %981 = vperm.xlu0 %980, %v710
        %v982 = vpop.permute.xlu0 %981
        %v983 = vlaneseq
        %v984 = vshrl.u32 %v983, 7
        %v985 = vadd.s32 %v984, 88
        %986 = vset.pattern.permute.xlu0 %v985
        %987 = vperm.xlu0 %986, %v710
        %v988 = vpop.permute.xlu0 %987
        %v989 = vlaneseq
        %v990 = vshrl.u32 %v989, 7
        %v991 = vadd.s32 %v990, 80
        %992 = vset.pattern.permute.xlu0 %v991
        %993 = vperm.xlu0 %992, %v723
        %v994 = vpop.permute.xlu0 %993
        %v995 = vlaneseq
        %v996 = vshrl.u32 %v995, 7
        %v997 = vadd.s32 %v996, 88
        %998 = vset.pattern.permute.xlu0 %v997
        %999 = vperm.xlu0 %998, %v723
        %v1000 = vpop.permute.xlu0 %999
        %v1001 = vlaneseq
        %v1002 = vshrl.u32 %v1001, 7
        %v1003 = vadd.s32 %v1002, 80
        %1004 = vset.pattern.permute.xlu0 %v1003
        %1005 = vperm.xlu0 %1004, %v736
        %v1006 = vpop.permute.xlu0 %1005
        %v1007 = vlaneseq
        %v1008 = vshrl.u32 %v1007, 7
        %v1009 = vadd.s32 %v1008, 88
        %1010 = vset.pattern.permute.xlu0 %v1009
        %1011 = vperm.xlu0 %1010, %v736
        %v1012 = vpop.permute.xlu0 %1011
        %v1013 = vlaneseq
        %v1014 = vshrl.u32 %v1013, 7
        %v1015 = vadd.s32 %v1014, 80
        %1016 = vset.pattern.permute.xlu0 %v1015
        %1017 = vperm.xlu0 %1016, %v749
        %v1018 = vpop.permute.xlu0 %1017
        %v1019 = vlaneseq
        %v1020 = vshrl.u32 %v1019, 7
        %v1021 = vadd.s32 %v1020, 88
        %1022 = vset.pattern.permute.xlu0 %v1021
        %1023 = vperm.xlu0 %1022, %v749
        %v1024 = vpop.permute.xlu0 %1023
        %v1025 = vlaneseq
        %v1026 = vshrl.u32 %v1025, 7
        %v1027 = vadd.s32 %v1026, 80
        %1028 = vset.pattern.permute.xlu0 %v1027
        %1029 = vperm.xlu0 %1028, %v762
        %v1030 = vpop.permute.xlu0 %1029
        %v1031 = vlaneseq
        %v1032 = vshrl.u32 %v1031, 7
        %v1033 = vadd.s32 %v1032, 88
        %1034 = vset.pattern.permute.xlu0 %v1033
        %1035 = vperm.xlu0 %1034, %v762
        %v1036 = vpop.permute.xlu0 %1035
        %v1037 = vlaneseq
        %v1038 = vshrl.u32 %v1037, 7
        %v1039 = vadd.s32 %v1038, 80
        %1040 = vset.pattern.permute.xlu0 %v1039
        %1041 = vperm.xlu0 %1040, %v775
        %v1042 = vpop.permute.xlu0 %1041
        %v1043 = vlaneseq
        %v1044 = vshrl.u32 %v1043, 7
        %v1045 = vadd.s32 %v1044, 88
        %1046 = vset.pattern.permute.xlu0 %v1045
        %1047 = vperm.xlu0 %1046, %v775
        %v1048 = vpop.permute.xlu0 %1047
        %v1049 = vmul.f32 %v937, %v958
        %v1050 = vmul.f32 %v938, %v964
        %v1051 = vmul.f32 %v939, %v970
        %v1052 = vmul.f32 %v940, %v976
        %v1053 = vmul.f32 %v941, %v982
        %v1054 = vmul.f32 %v942, %v988
        %v1055 = vmul.f32 %v943, %v994
        %v1056 = vmul.f32 %v944, %v1000
        %v1057 = vmul.f32 %v945, %v1006
        %v1058 = vmul.f32 %v946, %v1012
        %v1059 = vmul.f32 %v947, %v1018
        %v1060 = vmul.f32 %v948, %v1024
        %v1061 = vmul.f32 %v949, %v1030
        %v1062 = vmul.f32 %v950, %v1036
        %v1063 = vmul.f32 %v951, %v1042
        %v1064 = vmul.f32 %v952, %v1048
        %v1065 = vsel %vm539, %v1049, 0.0
        %v1066 = vsel %vm539, %v1050, 0.0
        %v1067 = vadd.f32 %v1065, %v1066
        %v1068 = vrot.slane %v1067, 4
        %v1069 = vadd.f32 %v1067, %v1068
        %v1070 = vrot.slane %v1069, 2
        %v1071 = vadd.f32 %v1069, %v1070
        %v1072 = vrot.slane %v1071, 1
        %v1073 = vadd.f32 %v1071, %v1072
        %v1074 = vsel %vm539, %v1051, 0.0
        %v1075 = vsel %vm539, %v1052, 0.0
        %v1076 = vadd.f32 %v1074, %v1075
        %v1077 = vrot.slane %v1076, 4
        %v1078 = vadd.f32 %v1076, %v1077
        %v1079 = vrot.slane %v1078, 2
        %v1080 = vadd.f32 %v1078, %v1079
        %v1081 = vrot.slane %v1080, 1
        %v1082 = vadd.f32 %v1080, %v1081
        %v1083 = vsel %vm539, %v1053, 0.0
        %v1084 = vsel %vm539, %v1054, 0.0
        %v1085 = vadd.f32 %v1083, %v1084
        %v1086 = vrot.slane %v1085, 4
        %v1087 = vadd.f32 %v1085, %v1086
        %v1088 = vrot.slane %v1087, 2
        %v1089 = vadd.f32 %v1087, %v1088
        %v1090 = vrot.slane %v1089, 1
        %v1091 = vadd.f32 %v1089, %v1090
        %v1092 = vsel %vm539, %v1055, 0.0
        %v1093 = vsel %vm539, %v1056, 0.0
        %v1094 = vadd.f32 %v1092, %v1093
        %v1095 = vrot.slane %v1094, 4
        %v1096 = vadd.f32 %v1094, %v1095
        %v1097 = vrot.slane %v1096, 2
        %v1098 = vadd.f32 %v1096, %v1097
        %v1099 = vrot.slane %v1098, 1
        %v1100 = vadd.f32 %v1098, %v1099
        %v1101 = vsel %vm539, %v1057, 0.0
        %v1102 = vsel %vm539, %v1058, 0.0
        %v1103 = vadd.f32 %v1101, %v1102
        %v1104 = vrot.slane %v1103, 4
        %v1105 = vadd.f32 %v1103, %v1104
        %v1106 = vrot.slane %v1105, 2
        %v1107 = vadd.f32 %v1105, %v1106
        %v1108 = vrot.slane %v1107, 1
        %v1109 = vadd.f32 %v1107, %v1108
        %v1110 = vsel %vm539, %v1059, 0.0
        %v1111 = vsel %vm539, %v1060, 0.0
        %v1112 = vadd.f32 %v1110, %v1111
        %v1113 = vrot.slane %v1112, 4
        %v1114 = vadd.f32 %v1112, %v1113
        %v1115 = vrot.slane %v1114, 2
        %v1116 = vadd.f32 %v1114, %v1115
        %v1117 = vrot.slane %v1116, 1
        %v1118 = vadd.f32 %v1116, %v1117
        %v1119 = vsel %vm539, %v1061, 0.0
        %v1120 = vsel %vm539, %v1062, 0.0
        %v1121 = vadd.f32 %v1119, %v1120
        %v1122 = vrot.slane %v1121, 4
        %v1123 = vadd.f32 %v1121, %v1122
        %v1124 = vrot.slane %v1123, 2
        %v1125 = vadd.f32 %v1123, %v1124
        %v1126 = vrot.slane %v1125, 1
        %v1127 = vadd.f32 %v1125, %v1126
        %v1128 = vsel %vm539, %v1063, 0.0
        %v1129 = vsel %vm539, %v1064, 0.0
        %v1130 = vadd.f32 %v1128, %v1129
        %v1131 = vrot.slane %v1130, 4
        %v1132 = vadd.f32 %v1130, %v1131
        %v1133 = vrot.slane %v1132, 2
        %v1134 = vadd.f32 %v1132, %v1133
        %v1135 = vrot.slane %v1134, 1
        %v1136 = vadd.f32 %v1134, %v1135
        %v1137 = vld [vmem:[%s7] sm:$0x1]
        %v1139 = vperm.slane %v1137, 0
        %v1141 = vmul.f32 %v505, %v1139
        %v1143 = vrot.slane %v1141, 1
        %v1144 = vrot.slane %v1141, 2
        %v1145 = vrot.slane %v1141, 3
        %v1146 = vrot.slane %v1141, 4
        %v1147 = vrot.slane %v1141, 5
        %v1148 = vrot.slane %v1141, 6
        %v1149 = vrot.slane %v1141, 7
        %v1158 = vadd.f32 %v1073, %v1141
        %v1159 = vadd.f32 %v1082, %v1143
        %v1160 = vadd.f32 %v1091, %v1144
        %v1161 = vadd.f32 %v1100, %v1145
        %v1162 = vadd.f32 %v1109, %v1146
        %v1163 = vadd.f32 %v1118, %v1147
        %v1164 = vadd.f32 %v1127, %v1148
        %v1165 = vadd.f32 %v1136, %v1149
        %v1166 = vxor.u32 %v433, 2147483648
        %v1167 = vmul.f32 %v1166, 1.442695
        %v1168 = vpow.pop %v1167
        %v1169 = vadd.f32 %v1168, 1.0
        %v1170 = vrcp.pop %v1169
        %v1171 = vmul.f32 %v1169, %v1170
        %v1172 = vsub.f32 1.0, %v1171
        %v1173 = vmul.f32 %v1170, %v1172
        %v1174 = vadd.f32 %v1170, %v1173
        %vm1175 = vweird.f32 %v1169
        %vm1176 = vweird.f32 %v1170
        %vm1177 = vmor %vm1175, %vm1176
        %v1178 = vsel %vm1177, %v1170, %v1174
        %v1179 = vand.u32 2147483647, %v1169
        %vm1180 = vcmp.eq.f32.partialorder %v1179, 8.507059e+37
        %v1181 = vand.u32 %v1169, 2147483648
        %v1182 = vor.u32 1.1754944e-38, %v1181
        %v1183 = vsel %vm1180, %v1182, %v1178
        %v1184 = vmul.f32 1.0, %v1183
        %v1185 = vmul.f32 %v433, %v1184
        %v1187 = vrot.slane %v1185, 1
        %v1188 = vrot.slane %v1185, 2
        %v1189 = vrot.slane %v1185, 3
        %v1190 = vrot.slane %v1185, 4
        %v1191 = vrot.slane %v1185, 5
        %v1192 = vrot.slane %v1185, 6
        %v1193 = vrot.slane %v1185, 7
        %1194 = vrot.lane.b32.xlu0 %v1185, 64
        %v1195 = vpop.permute.xlu0 %1194
        %1196 = vrot.lane.b32.xlu0 %v1187, 64
        %v1197 = vpop.permute.xlu0 %1196
        %1198 = vrot.lane.b32.xlu0 %v1188, 64
        %v1199 = vpop.permute.xlu0 %1198
        %1200 = vrot.lane.b32.xlu0 %v1189, 64
        %v1201 = vpop.permute.xlu0 %1200
        %1202 = vrot.lane.b32.xlu0 %v1190, 64
        %v1203 = vpop.permute.xlu0 %1202
        %1204 = vrot.lane.b32.xlu0 %v1191, 64
        %v1205 = vpop.permute.xlu0 %1204
        %1206 = vrot.lane.b32.xlu0 %v1192, 64
        %v1207 = vpop.permute.xlu0 %1206
        %1208 = vrot.lane.b32.xlu0 %v1193, 64
        %v1209 = vpop.permute.xlu0 %1208
        %v1218 = vmul.f32 %v1158, %v1195
        %v1219 = vmul.f32 %v1159, %v1197
        %v1220 = vmul.f32 %v1160, %v1199
        %v1221 = vmul.f32 %v1161, %v1201
        %v1222 = vmul.f32 %v1162, %v1203
        %v1223 = vmul.f32 %v1163, %v1205
        %v1224 = vmul.f32 %v1164, %v1207
        %v1225 = vmul.f32 %v1165, %v1209
        %v1226 = vpack.c.bf16 %v1218, %v1218
        %v1227 = vpack.c.bf16 %v1219, %v1219
        %v1228 = vpack.c.bf16 %v1220, %v1220
        %v1229 = vpack.c.bf16 %v1221, %v1221
        %v1230 = vpack.c.bf16 %v1222, %v1222
        %v1231 = vpack.c.bf16 %v1223, %v1223
        %v1232 = vpack.c.bf16 %v1224, %v1224
        %v1233 = vpack.c.bf16 %v1225, %v1225
        %v1234 = vld [vmem:[%s8] sm:$0xf]
        %v1235 = vld [vmem:[%s8 + $0x4] sm:$0xf]
        %v1236 = vld [vmem:[%s8 + $0x8] sm:$0xf]
        %v1237 = vld [vmem:[%s8 + $0xc] sm:$0xf]
        %v1238 = vld [vmem:[%s8 + $0x10] sm:$0xf]
        %v1239 = vld [vmem:[%s8 + $0x14] sm:$0xf]
        %v1240 = vld [vmem:[%s8 + $0x18] sm:$0xf]
        %v1241 = vld [vmem:[%s8 + $0x1c] sm:$0xf]
        %v1250 = vunpack.c.l.b16 %v1226
        %v1251 = vunpack.c.l.b16 %v1227
        %v1252 = vunpack.c.l.b16 %v1228
        %v1253 = vunpack.c.l.b16 %v1229
        %v1254 = vunpack.c.l.b16 %v1230
        %v1255 = vunpack.c.l.b16 %v1231
        %v1256 = vunpack.c.l.b16 %v1232
        %v1257 = vunpack.c.l.b16 %v1233
        %v1258 = vrot.slane %v1251, 7
        %vm1259 = vcmask 1041409
        %v1260 = vsel %vm1259, %v1258, %v1250
        %v1261 = vrot.slane %v1252, 6
        %vm1262 = vcmask 1042434
        %v1263 = vsel %vm1262, %v1261, %v1260
        %v1264 = vrot.slane %v1253, 5
        %vm1265 = vcmask 1043459
        %v1266 = vsel %vm1265, %v1264, %v1263
        %v1267 = vrot.slane %v1254, 4
        %vm1268 = vcmask 1044484
        %v1269 = vsel %vm1268, %v1267, %v1266
        %v1270 = vrot.slane %v1255, 3
        %vm1271 = vcmask 1045509
        %v1272 = vsel %vm1271, %v1270, %v1269
        %v1273 = vrot.slane %v1256, 2
        %vm1274 = vcmask 1046534
        %v1275 = vsel %vm1274, %v1273, %v1272
        %v1276 = vrot.slane %v1257, 1
        %vm1277 = vcmask 1047559
        %v1278 = vsel %vm1277, %v1276, %v1275
        %v1279 = vpack.c.b16 %v1278, %v1278
        %v1288 = vunpack.c.l.b16 %v1234
        %v1289 = vunpack.c.l.b16 %v1235
        %v1290 = vunpack.c.l.b16 %v1236
        %v1291 = vunpack.c.l.b16 %v1237
        %v1292 = vunpack.c.l.b16 %v1238
        %v1293 = vunpack.c.l.b16 %v1239
        %v1294 = vunpack.c.l.b16 %v1240
        %v1295 = vunpack.c.l.b16 %v1241
        %v1296 = vpack.c.b16 %v1289, %v1288
        %v1297 = vpack.c.b16 %v1291, %v1290
        %v1298 = vpack.c.b16 %v1293, %v1292
        %v1299 = vpack.c.b16 %v1295, %v1294
        %v1305 = vsel %vm539, %v1279, 0
        %1307 = vmatpush.bf16.msra.mxu0 0
        %1308 = vmatpush.bf16.msra.mxu0 0
        %1309 = vmatpush.bf16.msra.mxu0 0
        %1310 = vmatpush.bf16.msra.mxu0 0
        %1311 = vmatpush.bf16.msra.mxu0 %v1299
        %1312 = vmatpush.bf16.msra.mxu0 %v1298
        %1313 = vmatpush.bf16.msra.mxu0 %v1297
        %1314 = vmatpush.bf16.msra.mxu0 %v1296
        %1315 = vmatmul.bf16.gmra.mxu0 %v1305
        %v1316 = vpop.f32.mrf.mxu0
        %v1317 = vadd.f32 0.0, %v1316
        %v1318 = vpop.f32.mrf.mxu0
        %1319 = vdwg.mxu0
        %v1320 = vadd.f32 %v401, %v1317
        %1321 = vst.msk [vmem:[%s395] sm:$0xff] %vm419, %v1320
        %v1322 = vsel %vm419, %v1320, 0.0
        %v1323 = vrot.slane %v1322, 4
        %v1324 = vadd.f32 %v1322, %v1323
        %v1325 = vrot.slane %v1324, 2
        %v1326 = vadd.f32 %v1324, %v1325
        %v1327 = vrot.slane %v1326, 1
        %v1328 = vadd.f32 %v1326, %v1327
        %v1329 = vmul.f32 %v1320, %v1320
        %v1330 = vsel %vm419, %v1329, 0.0
        %v1331 = vrot.slane %v1330, 4
        %v1332 = vadd.f32 %v1330, %v1331
        %v1333 = vrot.slane %v1332, 2
        %v1334 = vadd.f32 %v1332, %v1333
        %v1335 = vrot.slane %v1334, 1
        %v1336 = vadd.f32 %v1334, %v1335
        %vm1337 = vcmask 1040384
        %v1338 = vsel %vm1337, %v1328, %v1336
        %vm1339 = vcmask 254976
        %1340 = vst.msk [vmem:[%s399] sm:$0x3] %vm1339, %v1338
        %p1341 = scmp.lt.s32.totalorder %s24, 1
        %s1342 = scalar_select %p1341, %s24, 1
        %s1343 = smul.addr %s1342, 8
        %s1344 = scalar_lea.vmem %s9, %s1343
        %p1345 = scmp.lt.s32.totalorder %s24, 1
        %s1346 = scalar_select %p1345, %s24, 1
        %s1347 = smul.addr %s1346, 2
        %s1348 = scalar_lea.vmem %s10, %s1347
        // Predicated region
        $region65: #{tsm_encoder_layer.2} parent=55 // pred_check
          %p1349 = pneg %p236
        $region66: #{tsm_encoder_layer.2} parent=55 // pred_check_branch
          %1351 = sbr.rel (%p1349) target = $region68
        $region67: #{tsm_encoder_layer.2} parent=55 // pred_region
          _
        $region68: #{tsm_encoder_layer.2} parent=55 // pred_fallthru
          _
        // Predicated region
        $region69: #{tsm_encoder_layer.2} parent=55 // pred_check
          %p1352 = pneg %p262
        $region70: #{tsm_encoder_layer.2} parent=55 // pred_check_branch
          %1354 = sbr.rel (%p1352) target = $region72
        $region71: #{tsm_encoder_layer.2} parent=55 // pred_region
          _
        $region72: #{tsm_encoder_layer.2} parent=55 // pred_fallthru
          _
      $region56: #{tsm_encoder_layer.2} parent=5 // pred_fallthru
        _
      %p1355 = scmp.le.s32.totalorder 2, %s19
      // Predicated region
      $region73: #{tsm_encoder_layer.2} parent=5 // pred_check
        %p1356 = pneg %p1355
      $region74: #{tsm_encoder_layer.2} parent=5 // pred_check_branch
        %1358 = sbr.rel (%p1356) target = $region76
      $region75: #{tsm_encoder_layer.2} parent=5 // pred_region
        %s1359 = ssub.s32 %s19, 2
        // Predicated region
        $region77: #{tsm_encoder_layer.2} parent=75 // pred_check
          %p1360 = pneg %p242
        $region78: #{tsm_encoder_layer.2} parent=75 // pred_check_branch
          %1362 = sbr.rel (%p1360) target = $region80
        $region79: #{tsm_encoder_layer.2} parent=75 // pred_region
          %p1363 = scmp.lt.s32.totalorder %s25, 1
          %s1364 = scalar_select %p1363, %s25, 1
          %s1365 = smul.addr %s1364, 8
          %s1366 = scalar_lea.vmem %s9, %s1365
        $region80: #{tsm_encoder_layer.2} parent=75 // pred_fallthru
          _
        // Predicated region
        $region81: #{tsm_encoder_layer.2} parent=75 // pred_check
          %p1367 = pneg %p268
        $region82: #{tsm_encoder_layer.2} parent=75 // pred_check_branch
          %1369 = sbr.rel (%p1367) target = $region84
        $region83: #{tsm_encoder_layer.2} parent=75 // pred_region
          %p1370 = scmp.lt.s32.totalorder %s25, 1
          %s1371 = scalar_select %p1370, %s25, 1
          %s1372 = smul.addr %s1371, 2
          %s1373 = scalar_lea.vmem %s10, %s1372
        $region84: #{tsm_encoder_layer.2} parent=75 // pred_fallthru
          _
      $region76: #{tsm_encoder_layer.2} parent=5 // pred_fallthru
        _
    $region6: #{tsm_encoder_layer.2} parent=1 // loop_footer
      %s23 = sadd.s32 1, %s19
    $region7: #{tsm_encoder_layer.2} parent=1 // loop_footer_branch
      %18 = sbr.rel target = $region3
    $region8: #{tsm_encoder_layer.2} parent=1 // loop_exit
      _
    %1374 = vsyncpa [#allocation6], 1
    %s1375 = scalar_lea.sflag [#allocation6], 1
    %1376 = vsyncpa %s1375, 1
    %1377 = vsyncpa [#allocation8], 1

</llo_original>
